<compile_context>
chip_gen: v7x
topology: tpu7x:2x2x1
jax: 0.10.0
libtpu: 0.0.40
codegen_flags: <defaults>
</compile_context>

<pallas_src>
import jax
import jax.numpy as jnp
from jax.experimental import pallas as pl
from jax.experimental.pallas import tpu as pltpu

# ---------------- sizes ----------------
X_SIZE = 48       # AST node feature size (x_size)
H_SIZE = 64       # tree-LSTM hidden size (== TGAT in_feats for 'tgat')
N_CFG = 8         # B: number of CFG nodes == number of ASTs per graph
N_LEAF = 7        # L: leaves per AST (node 0 is the root)
TYPE_DIM = 100    # cfg.ndata['type'] feature size (type_liner: 100 -> 64)
N_HEADS = 4
OUT_FEATS = 64
NEG_SLOPE = 0.2

# ---------------- packed weight slab layout (all row offsets 8-aligned) ------
SLAB_W = 256
R_W_IOU = 0       # (48, 192)   W_iou
R_B_IOU = 48      # (1, 192)    b_iou
R_U_IOU = 56      # (64, 192)   U_iou
R_UF_W = 120      # (64, 64)    U_f weight
R_UF_B = 184      # (1, 64)     U_f bias
R_W_TF = 192      # (100, 256)  folded type_liner @ fc
R_A_LR = 296      # (2*NH, 256) head-block-diag [attn_l; attn_r]
R_BIAS = 304      # (NH*B, 64)  GAT bias replicated per (head, dst) row
R_W_MLP = 336     # (128, 2 -> padded to 128) folded linner1..4
R_B_MLP = 464     # (1, 2 -> padded to 128)
SLAB_ROWS = 472


# ---------------- fused kernel: tree-LSTM -> TGAT -> classifier --------------
def sagnn_kernel(x_ref, c0_ref, type_ref, adj_ref, w_ref, out_ref):
    H, B, L, NH, F = H_SIZE, N_CFG, N_LEAF, N_HEADS, OUT_FEATS
    f32 = jnp.float32

    # static slices into the packed weight slab (layout plumbing, no compute)
    w_iou = w_ref[R_W_IOU:R_W_IOU + X_SIZE, :]          # (48, 256), cols>=192 zero
    b_iou = w_ref[R_B_IOU:R_B_IOU + 1, :]               # (1, 256)
    u_iou = w_ref[R_U_IOU:R_U_IOU + H, :]               # (64, 256)
    u_f_w = w_ref[R_UF_W:R_UF_W + H, 0:H]               # (64, 64)
    u_f_b = w_ref[R_UF_B:R_UF_B + 1, 0:H]               # (1, 64)
    w_tf = w_ref[R_W_TF:R_W_TF + TYPE_DIM, :]           # (100, 256)
    a_lr = w_ref[R_A_LR:R_A_LR + 2 * NH, :]             # (8, 256)
    bias_rep = w_ref[R_BIAS:R_BIAS + NH * B, 0:F]       # (32, 64)
    w_mlp = w_ref[R_W_MLP:R_W_MLP + 128, 0:128]         # (128, 128), cols>=2 zero
    b_mlp = w_ref[R_B_MLP:R_B_MLP + 1, 0:128]           # (1, 128)

    # ======== ChildSum TreeLSTM (2-level tree: leaves then root) ========
    # leaf apply: iou = W_iou(x) + b_iou ; c = i*u + c0 ; h = o*tanh(c)
    iou = jnp.dot(x_ref[...], w_iou, preferred_element_type=f32) + b_iou  # (56,256)
    io = jax.nn.sigmoid(iou[:, :2 * H])
    u = jnp.tanh(iou[:, 2 * H:3 * H])
    c_leaf = io[:, :H] * u + c0_ref[...]
    h_leaf = io[:, H:2 * H] * jnp.tanh(c_leaf)          # (L*B, H), rows l*B + b

    # root reduce: h_tild = sum(children h); c = sum(sigmoid(U_f(h)) * c_child)
    f_gate = jax.nn.sigmoid(
        jnp.dot(h_leaf, u_f_w, preferred_element_type=f32) + u_f_b)
    fc = f_gate * c_leaf
    h_tild = h_leaf[0:B, :]
    c_red = fc[0:B, :]
    for l in range(1, L):                               # static, (8,H) tile-aligned
        h_tild = h_tild + h_leaf[l * B:(l + 1) * B, :]
        c_red = c_red + fc[l * B:(l + 1) * B, :]

    # root apply: iou = U_iou(h_tild) + b_iou
    iou_r = jnp.dot(h_tild, u_iou, preferred_element_type=f32) + b_iou    # (8,256)
    io_r = jax.nn.sigmoid(iou_r[:, :2 * H])
    c_root = io_r[:, :H] * jnp.tanh(iou_r[:, 2 * H:3 * H]) + c_red
    h_root = io_r[:, H:2 * H] * jnp.tanh(c_root)        # (B, H): 'feature'=='syntax'

    # ======== TGATConv: dense masked edge-softmax, heads batched on sublanes ====
    fsrc = jnp.dot(type_ref[...], w_tf, preferred_element_type=f32)       # (B, 256)
    nt = (((1,), (1,)), ((), ()))
    lr = jax.lax.dot_general(a_lr, fsrc, nt, preferred_element_type=f32)  # (2NH, B)
    elT = lr[0:NH, :]        # el[h, src]
    erT = lr[NH:2 * NH, :]   # er[h, dst]

    # e[h, dst, src] = leaky_relu(el[h, src] + er[h, dst])  -- no selector matmuls
    el3 = jnp.broadcast_to(elT[:, None, :], (NH, B, B))                   # VPU splat
    rI = jax.lax.broadcasted_iota(jnp.int32, (B, B), 0)
    cI = jax.lax.broadcasted_iota(jnp.int32, (B, B), 1)
    eyeB = (rI == cI).astype(f32)
    er3 = jnp.sum(erT[:, None, :] * eyeB[None, :, :], axis=-1,
                  keepdims=True)                                          # (NH, B, 1)
    e = el3 + er3
    e = jnp.where(e > 0, e, NEG_SLOPE * e)                                # leaky_relu

    adj_b = adj_ref[...]                                                  # (B,B) 0/1
    e = jnp.where(adj_b[None, :, :] > 0, e, -1e30)                        # mask
    m = jnp.max(e, axis=-1, keepdims=True)
    p = jnp.exp(e - m) * adj_b[None, :, :]
    denom = jnp.sum(p, axis=-1, keepdims=True)
    a = p / jnp.maximum(denom, 1e-30)      # 0-in-degree dst -> zeros, never NaN

    a2 = a.reshape(NH * B, B)                                             # rows h*B+d
    rst = jnp.dot(a2, h_root, preferred_element_type=f32)                 # (NH*B, F)
    rst = jnp.maximum(rst + bias_rep, 0.0)                                # +bias, ReLU
    acc = rst[0:B, :]
    for hd in range(1, NH):                                               # mean over heads
        acc = acc + rst[hd * B:(hd + 1) * B, :]
    rst_mean = acc * (1.0 / NH)                                           # (B, F)

    # cat(rst, syntax) -> one lane-dense (B, 128) slab feeding the head
    rst_cat = jnp.concatenate([rst_mean, h_root], axis=1)

    # ======== classifier head: folded affine, lane-dense (B, 128) store ========
    out_ref[...] = (jnp.dot(rst_cat, w_mlp, preferred_element_type=f32) + b_mlp)


# ---------------- parameter construction (deterministic) ---------------------
def make_params():
    ks = jax.random.split(jax.random.PRNGKey(0), 16)
    nrm = lambda k, s: (0.1 * jax.random.normal(k, s)).astype(jnp.float32)
    return {
        # ChildSumTreeLSTMCell (weights stored pre-transposed: [in, out])
        "w_iou": nrm(ks[0], (X_SIZE, 3 * H_SIZE)),
        "b_iou": jnp.zeros((1, 3 * H_SIZE), jnp.float32),
        "u_iou": nrm(ks[1], (H_SIZE, 3 * H_SIZE)),
        "u_f_w": nrm(ks[2], (H_SIZE, H_SIZE)),
        "u_f_b": nrm(ks[3], (1, H_SIZE)),
        # TGATConv
        "w_type": nrm(ks[4], (TYPE_DIM, 64)),
        "w_fc": nrm(ks[5], (64, N_HEADS * OUT_FEATS)),
        "attn_l": nrm(ks[6], (1, N_HEADS * OUT_FEATS)),
        "attn_r": nrm(ks[7], (1, N_HEADS * OUT_FEATS)),
        "bias_gat": jnp.zeros((1, N_HEADS * OUT_FEATS), jnp.float32),
        # MLP head (linner1..linner4)
        "w1": nrm(ks[8], (128, 64)), "b1": nrm(ks[9], (1, 64)),
        "w2": nrm(ks[10], (64, 32)), "b2": nrm(ks[11], (1, 32)),
        "w3": nrm(ks[12], (32, 16)), "b3": nrm(ks[13], (1, 16)),
        "w4": nrm(ks[14], (16, 2)), "b4": nrm(ks[15], (1, 2)),
    }


# ---------------- wrapper: pack weights into one lane-dense slab -------------
def _pack_weights(params):
    def put(slab, r, a):
        return slab.at[r:r + a.shape[0], 0:a.shape[1]].set(a)

    slab = jnp.zeros((SLAB_ROWS, SLAB_W), jnp.float32)
    slab = put(slab, R_W_IOU, params["w_iou"])
    slab = put(slab, R_B_IOU, params["b_iou"])
    slab = put(slab, R_U_IOU, params["u_iou"])
    slab = put(slab, R_UF_W, params["u_f_w"])
    slab = put(slab, R_UF_B, params["u_f_b"])
    # fold type_liner (100->64) and fc (64->NH*F) into one (100, 256) weight
    slab = put(slab, R_W_TF, params["w_type"] @ params["w_fc"])
    # head-block-diagonal attention rows: row h keeps only head h's coefficients
    NHF = N_HEADS * OUT_FEATS
    head_mask = (jnp.arange(NHF)[None, :] // OUT_FEATS
                 == jnp.arange(N_HEADS)[:, None]).astype(jnp.float32)     # (NH, NHF)
    a_lr = jnp.concatenate([head_mask * params["attn_l"],
                            head_mask * params["attn_r"]], axis=0)        # (2NH, NHF)
    slab = put(slab, R_A_LR, a_lr)
    # GAT bias replicated to (NH*B, F): row h*B + d carries head h's bias
    bias_hf = params["bias_gat"].reshape(N_HEADS, 1, OUT_FEATS)
    bias_rep = jnp.broadcast_to(bias_hf, (N_HEADS, N_CFG, OUT_FEATS)
                                ).reshape(N_HEADS * N_CFG, OUT_FEATS)
    slab = put(slab, R_BIAS, bias_rep)
    # fold the activation-free MLP head (linner1..4) into one affine, padded to
    # 128 output lanes so the kernel's output store is lane-dense.
    w_mlp = params["w1"] @ params["w2"] @ params["w3"] @ params["w4"]     # (128, 2)
    b_mlp = (((params["b1"] @ params["w2"] + params["b2"]) @ params["w3"]
              + params["b3"]) @ params["w4"] + params["b4"])              # (1, 2)
    slab = put(slab, R_W_MLP, w_mlp)
    slab = put(slab, R_B_MLP, b_mlp)
    return slab


# ---------------- full forward (G graphs per call, parallel grid) -------------
def sagnn_forward(params, x_ast, h0, c0, cfg_type, adj):
    del h0  # ast.ndata['h'] is overwritten by prop_nodes_topo for every node
    G = x_ast.shape[0]
    B, L = N_CFG, N_LEAF

    # leaf-major flattening per graph: row = g*(L*B) + l*B + b
    x_leaf = jnp.transpose(x_ast[:, :, 1:, :], (0, 2, 1, 3)).reshape(G * L * B, X_SIZE)
    c_leaf = jnp.transpose(c0[:, :, 1:, :], (0, 2, 1, 3)).reshape(G * L * B, H_SIZE)
    type_flat = cfg_type.reshape(G * B, TYPE_DIM)
    # binarize: edge_softmax only depends on edge existence (0/1 mask semantics)
    adj_bin = (adj > 0).astype(jnp.float32).reshape(G * B, B)
    slab = _pack_weights(params)

    out = pl.pallas_call(
        sagnn_kernel,
        out_shape=jax.ShapeDtypeStruct((G * B, 128), jnp.float32),
        grid=(G,),
        in_specs=[
            pl.BlockSpec((L * B, X_SIZE), lambda g: (g, 0)),
            pl.BlockSpec((L * B, H_SIZE), lambda g: (g, 0)),
            pl.BlockSpec((B, TYPE_DIM), lambda g: (g, 0)),
            pl.BlockSpec((B, B), lambda g: (g, 0)),
            pl.BlockSpec((SLAB_ROWS, SLAB_W), lambda g: (0, 0)),  # resident weights
        ],
        out_specs=pl.BlockSpec((B, 128), lambda g: (g, 0)),
        compiler_params=pltpu.CompilerParams(dimension_semantics=("parallel",)),
        cost_estimate=pl.CostEstimate(
            flops=2_900_000 * G, transcendentals=21_000 * G,
            bytes_accessed=500_000 + 36_000 * G),
    )(x_leaf, c_leaf, type_flat, adj_bin, slab)

    return out[:, :2].reshape(G, B, 2)   # slice the 2 logits from the padded slab


if __name__ == "__main__":
    key = jax.random.PRNGKey(0)
    k1, k2, k3 = jax.random.split(key, 3)

    params = make_params()
    G = 4  # graphs batched per pallas_call (grid axis, parallel on v7x's 2 TCs)

    # inputs: G independent (cfg, ast-batch) instances
    x_ast = jax.random.normal(k1, (G, N_CFG, 1 + N_LEAF, X_SIZE), jnp.float32)
    h0 = jnp.zeros((G, N_CFG, 1 + N_LEAF, H_SIZE), jnp.float32)
    c0 = 0.1 * jax.random.normal(k2, (G, N_CFG, 1 + N_LEAF, H_SIZE)).astype(jnp.float32)
    cfg_type = jax.random.normal(k3, (G, N_CFG, TYPE_DIM), jnp.float32)

    # CFG adjacency: ring edges (i -> i+1) plus self-loops, adj[dst, src].
    # Self-loops keep every dst at in-degree >= 1 (DGL raises on 0-in-degree);
    # the kernel additionally clamps the softmax denominator so it never NaNs.
    adj1 = jnp.eye(N_CFG, dtype=jnp.float32)
    src = jnp.arange(N_CFG)
    dst = (src + 1) % N_CFG
    adj1 = adj1.at[dst, src].set(1.0)
    adj = jnp.broadcast_to(adj1, (G, N_CFG, N_CFG))

    out = jax.jit(sagnn_forward)(params, x_ast, h0, c0, cfg_type, adj)
    jax.block_until_ready(out)
    assert out.shape == (G, N_CFG, 2) and out.dtype == jnp.float32
    assert bool(jnp.all(jnp.isfinite(out)))
    print("KERNEL_OK")
</pallas_src>

<mosaic_0001>
module attributes {stable_mosaic.version = 11 : i64} {
  func.func @sagnn_kernel(%arg0: i32, %arg1: memref<56x48xf32, #tpu.memory_space<vmem>>, %arg2: memref<56x64xf32, #tpu.memory_space<vmem>>, %arg3: memref<8x100xf32, #tpu.memory_space<vmem>>, %arg4: memref<8x8xf32, #tpu.memory_space<vmem>>, %arg5: memref<472x256xf32, #tpu.memory_space<vmem>>, %arg6: memref<8x128xf32, #tpu.memory_space<vmem>>) attributes {dimension_semantics = [#tpu.dimension_semantics<parallel>], iteration_bounds = array<i64: 4>, scalar_prefetch = 0 : i64, scratch_operands = 0 : i64, tpu.core_type = #tpu.core_type<tc>, window_params = [{transform_indices = @transform_0, window_bounds = array<i64: 56, 48>}, {transform_indices = @transform_1, window_bounds = array<i64: 56, 64>}, {transform_indices = @transform_2, window_bounds = array<i64: 8, 100>}, {transform_indices = @transform_3, window_bounds = array<i64: 8, 8>}, {pipeline_mode = #tpu.pipeline_mode<synchronous>, transform_indices = @transform_4, window_bounds = array<i64: 472, 256>}, {transform_indices = @transform_5, window_bounds = array<i64: 8, 128>}]} {
    %c0 = arith.constant 0 : index
    %c0_0 = arith.constant 0 : index
    %0 = vector.load %arg5[%c0, %c0_0] : memref<472x256xf32, #tpu.memory_space<vmem>>, vector<48x256xf32>
    %c48 = arith.constant 48 : index
    %c0_1 = arith.constant 0 : index
    %1 = vector.load %arg5[%c48, %c0_1] : memref<472x256xf32, #tpu.memory_space<vmem>>, vector<1x256xf32>
    %c56 = arith.constant 56 : index
    %c0_2 = arith.constant 0 : index
    %2 = vector.load %arg5[%c56, %c0_2] : memref<472x256xf32, #tpu.memory_space<vmem>>, vector<64x256xf32>
    %c120 = arith.constant 120 : index
    %c0_3 = arith.constant 0 : index
    %3 = vector.load %arg5[%c120, %c0_3] : memref<472x256xf32, #tpu.memory_space<vmem>>, vector<64x64xf32>
    %c184 = arith.constant 184 : index
    %c0_4 = arith.constant 0 : index
    %4 = vector.load %arg5[%c184, %c0_4] : memref<472x256xf32, #tpu.memory_space<vmem>>, vector<1x64xf32>
    %c192 = arith.constant 192 : index
    %c0_5 = arith.constant 0 : index
    %5 = vector.load %arg5[%c192, %c0_5] : memref<472x256xf32, #tpu.memory_space<vmem>>, vector<100x256xf32>
    %c296 = arith.constant 296 : index
    %c0_6 = arith.constant 0 : index
    %6 = vector.load %arg5[%c296, %c0_6] : memref<472x256xf32, #tpu.memory_space<vmem>>, vector<8x256xf32>
    %c304 = arith.constant 304 : index
    %c0_7 = arith.constant 0 : index
    %7 = vector.load %arg5[%c304, %c0_7] : memref<472x256xf32, #tpu.memory_space<vmem>>, vector<32x64xf32>
    %c336 = arith.constant 336 : index
    %c0_8 = arith.constant 0 : index
    %8 = vector.load %arg5[%c336, %c0_8] : memref<472x256xf32, #tpu.memory_space<vmem>>, vector<128x128xf32>
    %c464 = arith.constant 464 : index
    %c0_9 = arith.constant 0 : index
    %9 = vector.load %arg5[%c464, %c0_9] : memref<472x256xf32, #tpu.memory_space<vmem>>, vector<1x128xf32>
    %c0_10 = arith.constant 0 : index
    %c0_11 = arith.constant 0 : index
    %10 = vector.load %arg1[%c0_10, %c0_11] : memref<56x48xf32, #tpu.memory_space<vmem>>, vector<56x48xf32>
    %cst = arith.constant dense<0.000000e+00> : vector<56x256xf32>
    %11 = tpu.matmul %10, %0, %cst {dimension_numbers = #tpu.dot_dimension_numbers<[1], [0], [0], [1], [0, 0, 1, 1], [], []>} : vector<56x48xf32>, vector<48x256xf32>, vector<56x256xf32> -> vector<56x256xf32>
    %12 = vector.broadcast %1 : vector<1x256xf32> to vector<56x256xf32>
    %13 = arith.addf %11, %12 : vector<56x256xf32>
    %14 = vector.extract_strided_slice %13 {offsets = [0, 0], sizes = [56, 128], strides = [1, 1]} : vector<56x256xf32> to vector<56x128xf32>
    %15 = arith.negf %14 : vector<56x128xf32>
    %16 = math.exp %15 : vector<56x128xf32>
    %cst_12 = arith.constant 1.000000e+00 : f32
    %17 = vector.broadcast %cst_12 : f32 to vector<56x128xf32>
    %18 = arith.addf %17, %16 : vector<56x128xf32>
    %19 = arith.divf %17, %18 : vector<56x128xf32>
    %20 = vector.extract_strided_slice %13 {offsets = [0, 128], sizes = [56, 64], strides = [1, 1]} : vector<56x256xf32> to vector<56x64xf32>
    %21 = math.tanh %20 : vector<56x64xf32>
    %22 = vector.extract_strided_slice %19 {offsets = [0, 0], sizes = [56, 64], strides = [1, 1]} : vector<56x128xf32> to vector<56x64xf32>
    %23 = arith.mulf %22, %21 : vector<56x64xf32>
    %c0_13 = arith.constant 0 : index
    %c0_14 = arith.constant 0 : index
    %24 = vector.load %arg2[%c0_13, %c0_14] : memref<56x64xf32, #tpu.memory_space<vmem>>, vector<56x64xf32>
    %25 = arith.addf %23, %24 : vector<56x64xf32>
    %26 = vector.extract_strided_slice %19 {offsets = [0, 64], sizes = [56, 64], strides = [1, 1]} : vector<56x128xf32> to vector<56x64xf32>
    %27 = math.tanh %25 : vector<56x64xf32>
    %28 = arith.mulf %26, %27 : vector<56x64xf32>
    %cst_15 = arith.constant dense<0.000000e+00> : vector<56x64xf32>
    %29 = tpu.matmul %28, %3, %cst_15 {dimension_numbers = #tpu.dot_dimension_numbers<[1], [0], [0], [1], [0, 0, 1, 1], [], []>} : vector<56x64xf32>, vector<64x64xf32>, vector<56x64xf32> -> vector<56x64xf32>
    %30 = vector.broadcast %4 : vector<1x64xf32> to vector<56x64xf32>
    %31 = arith.addf %29, %30 : vector<56x64xf32>
    %32 = arith.negf %31 : vector<56x64xf32>
    %33 = math.exp %32 : vector<56x64xf32>
    %cst_16 = arith.constant 1.000000e+00 : f32
    %34 = vector.broadcast %cst_16 : f32 to vector<56x64xf32>
    %35 = arith.addf %34, %33 : vector<56x64xf32>
    %36 = arith.divf %34, %35 : vector<56x64xf32>
    %37 = arith.mulf %36, %25 : vector<56x64xf32>
    %38 = vector.extract_strided_slice %28 {offsets = [0, 0], sizes = [8, 64], strides = [1, 1]} : vector<56x64xf32> to vector<8x64xf32>
    %39 = vector.extract_strided_slice %37 {offsets = [0, 0], sizes = [8, 64], strides = [1, 1]} : vector<56x64xf32> to vector<8x64xf32>
    %40 = vector.extract_strided_slice %28 {offsets = [8, 0], sizes = [8, 64], strides = [1, 1]} : vector<56x64xf32> to vector<8x64xf32>
    %41 = arith.addf %38, %40 : vector<8x64xf32>
    %42 = vector.extract_strided_slice %37 {offsets = [8, 0], sizes = [8, 64], strides = [1, 1]} : vector<56x64xf32> to vector<8x64xf32>
    %43 = arith.addf %39, %42 : vector<8x64xf32>
    %44 = vector.extract_strided_slice %28 {offsets = [16, 0], sizes = [8, 64], strides = [1, 1]} : vector<56x64xf32> to vector<8x64xf32>
    %45 = arith.addf %41, %44 : vector<8x64xf32>
    %46 = vector.extract_strided_slice %37 {offsets = [16, 0], sizes = [8, 64], strides = [1, 1]} : vector<56x64xf32> to vector<8x64xf32>
    %47 = arith.addf %43, %46 : vector<8x64xf32>
    %48 = vector.extract_strided_slice %28 {offsets = [24, 0], sizes = [8, 64], strides = [1, 1]} : vector<56x64xf32> to vector<8x64xf32>
    %49 = arith.addf %45, %48 : vector<8x64xf32>
    %50 = vector.extract_strided_slice %37 {offsets = [24, 0], sizes = [8, 64], strides = [1, 1]} : vector<56x64xf32> to vector<8x64xf32>
    %51 = arith.addf %47, %50 : vector<8x64xf32>
    %52 = vector.extract_strided_slice %28 {offsets = [32, 0], sizes = [8, 64], strides = [1, 1]} : vector<56x64xf32> to vector<8x64xf32>
    %53 = arith.addf %49, %52 : vector<8x64xf32>
    %54 = vector.extract_strided_slice %37 {offsets = [32, 0], sizes = [8, 64], strides = [1, 1]} : vector<56x64xf32> to vector<8x64xf32>
    %55 = arith.addf %51, %54 : vector<8x64xf32>
    %56 = vector.extract_strided_slice %28 {offsets = [40, 0], sizes = [8, 64], strides = [1, 1]} : vector<56x64xf32> to vector<8x64xf32>
    %57 = arith.addf %53, %56 : vector<8x64xf32>
    %58 = vector.extract_strided_slice %37 {offsets = [40, 0], sizes = [8, 64], strides = [1, 1]} : vector<56x64xf32> to vector<8x64xf32>
    %59 = arith.addf %55, %58 : vector<8x64xf32>
    %60 = vector.extract_strided_slice %28 {offsets = [48, 0], sizes = [8, 64], strides = [1, 1]} : vector<56x64xf32> to vector<8x64xf32>
    %61 = arith.addf %57, %60 : vector<8x64xf32>
    %62 = vector.extract_strided_slice %37 {offsets = [48, 0], sizes = [8, 64], strides = [1, 1]} : vector<56x64xf32> to vector<8x64xf32>
    %63 = arith.addf %59, %62 : vector<8x64xf32>
    %cst_17 = arith.constant dense<0.000000e+00> : vector<8x256xf32>
    %64 = tpu.matmul %61, %2, %cst_17 {dimension_numbers = #tpu.dot_dimension_numbers<[1], [0], [0], [1], [0, 0, 1, 1], [], []>} : vector<8x64xf32>, vector<64x256xf32>, vector<8x256xf32> -> vector<8x256xf32>
    %65 = vector.broadcast %1 : vector<1x256xf32> to vector<8x256xf32>
    %66 = arith.addf %64, %65 : vector<8x256xf32>
    %67 = vector.extract_strided_slice %66 {offsets = [0, 0], sizes = [8, 128], strides = [1, 1]} : vector<8x256xf32> to vector<8x128xf32>
    %68 = arith.negf %67 : vector<8x128xf32>
    %69 = math.exp %68 : vector<8x128xf32>
    %cst_18 = arith.constant 1.000000e+00 : f32
    %70 = vector.broadcast %cst_18 : f32 to vector<8x128xf32>
    %71 = arith.addf %70, %69 : vector<8x128xf32>
    %72 = arith.divf %70, %71 : vector<8x128xf32>
    %73 = vector.extract_strided_slice %72 {offsets = [0, 0], sizes = [8, 64], strides = [1, 1]} : vector<8x128xf32> to vector<8x64xf32>
    %74 = vector.extract_strided_slice %66 {offsets = [0, 128], sizes = [8, 64], strides = [1, 1]} : vector<8x256xf32> to vector<8x64xf32>
    %75 = math.tanh %74 : vector<8x64xf32>
    %76 = arith.mulf %73, %75 : vector<8x64xf32>
    %77 = arith.addf %76, %63 : vector<8x64xf32>
    %78 = vector.extract_strided_slice %72 {offsets = [0, 64], sizes = [8, 64], strides = [1, 1]} : vector<8x128xf32> to vector<8x64xf32>
    %79 = math.tanh %77 : vector<8x64xf32>
    %80 = arith.mulf %78, %79 : vector<8x64xf32>
    %c0_19 = arith.constant 0 : index
    %c0_20 = arith.constant 0 : index
    %81 = vector.load %arg3[%c0_19, %c0_20] : memref<8x100xf32, #tpu.memory_space<vmem>>, vector<8x100xf32>
    %cst_21 = arith.constant dense<0.000000e+00> : vector<8x256xf32>
    %82 = tpu.matmul %81, %5, %cst_21 {dimension_numbers = #tpu.dot_dimension_numbers<[1], [0], [0], [1], [0, 0, 1, 1], [], []>} : vector<8x100xf32>, vector<100x256xf32>, vector<8x256xf32> -> vector<8x256xf32>
    %cst_22 = arith.constant dense<0.000000e+00> : vector<8x8xf32>
    %83 = tpu.matmul %6, %82, %cst_22 {dimension_numbers = #tpu.dot_dimension_numbers<[1], [1], [0], [0], [0, 0, 1, 0], [], []>} : vector<8x256xf32>, vector<8x256xf32>, vector<8x8xf32> -> vector<8x8xf32>
    %84 = vector.extract_strided_slice %83 {offsets = [0, 0], sizes = [4, 8], strides = [1, 1]} : vector<8x8xf32> to vector<4x8xf32>
    %85 = vector.extract_strided_slice %83 {offsets = [4, 0], sizes = [4, 8], strides = [1, 1]} : vector<8x8xf32> to vector<4x8xf32>
    %86 = vector.shape_cast %84 : vector<4x8xf32> to vector<4x1x8xf32>
    %87 = vector.shape_cast %86 : vector<4x1x8xf32> to vector<4x1x8xf32>
    %88 = vector.broadcast %87 : vector<4x1x8xf32> to vector<4x8x8xf32>
    %89 = tpu.iota {dimensions = array<i32: 0>} : vector<8x8xi32>
    %90 = tpu.iota {dimensions = array<i32: 1>} : vector<8x8xi32>
    %91 = arith.cmpi eq, %89, %90 : vector<8x8xi32>
    %92 = arith.extui %91 : vector<8x8xi1> to vector<8x8xi32>
    %93 = arith.sitofp %92 : vector<8x8xi32> to vector<8x8xf32>
    %94 = vector.shape_cast %85 : vector<4x8xf32> to vector<4x1x8xf32>
    %95 = vector.shape_cast %93 : vector<8x8xf32> to vector<1x8x8xf32>
    %96 = vector.broadcast %94 : vector<4x1x8xf32> to vector<4x8x8xf32>
    %97 = vector.broadcast %95 : vector<1x8x8xf32> to vector<4x8x8xf32>
    %98 = arith.mulf %96, %97 : vector<4x8x8xf32>
    %cst_23 = arith.constant dense<0.000000e+00> : vector<4x8xf32>
    %99 = vector.multi_reduction <add>, %98, %cst_23 [2] : vector<4x8x8xf32> to vector<4x8xf32>
    %100 = vector.shape_cast %99 : vector<4x8xf32> to vector<4x8x1xf32>
    %101 = vector.broadcast %100 : vector<4x8x1xf32> to vector<4x8x8xf32>
    %102 = arith.addf %88, %101 : vector<4x8x8xf32>
    %cst_24 = arith.constant 0.000000e+00 : f32
    %103 = vector.broadcast %cst_24 : f32 to vector<4x8x8xf32>
    %104 = arith.cmpf ogt, %102, %103 : vector<4x8x8xf32>
    %cst_25 = arith.constant 2.000000e-01 : f32
    %105 = vector.broadcast %cst_25 : f32 to vector<4x8x8xf32>
    %106 = arith.mulf %105, %102 : vector<4x8x8xf32>
    %107 = arith.select %104, %102, %106 : vector<4x8x8xi1>, vector<4x8x8xf32>
    %c0_26 = arith.constant 0 : index
    %c0_27 = arith.constant 0 : index
    %108 = vector.load %arg4[%c0_26, %c0_27] : memref<8x8xf32, #tpu.memory_space<vmem>>, vector<8x8xf32>
    %109 = vector.shape_cast %108 : vector<8x8xf32> to vector<1x8x8xf32>
    %cst_28 = arith.constant 0.000000e+00 : f32
    %110 = vector.broadcast %cst_28 : f32 to vector<1x8x8xf32>
    %111 = arith.cmpf ogt, %109, %110 : vector<1x8x8xf32>
    %cst_29 = arith.constant -1.000000e+30 : f32
    %112 = vector.shape_cast %111 : vector<1x8x8xi1> to vector<1x8x8xi1>
    %113 = vector.broadcast %112 : vector<1x8x8xi1> to vector<4x8x8xi1>
    %114 = vector.broadcast %cst_29 : f32 to vector<4x8x8xf32>
    %115 = arith.select %113, %107, %114 : vector<4x8x8xi1>, vector<4x8x8xf32>
    %cst_30 = arith.constant dense<0xFF800000> : vector<4x8xf32>
    %116 = vector.multi_reduction <maximumf>, %115, %cst_30 [2] : vector<4x8x8xf32> to vector<4x8xf32>
    %117 = vector.shape_cast %116 : vector<4x8xf32> to vector<4x8x1xf32>
    %118 = vector.broadcast %117 : vector<4x8x1xf32> to vector<4x8x8xf32>
    %119 = arith.subf %115, %118 : vector<4x8x8xf32>
    %120 = math.exp %119 : vector<4x8x8xf32>
    %121 = vector.shape_cast %108 : vector<8x8xf32> to vector<1x8x8xf32>
    %122 = vector.broadcast %121 : vector<1x8x8xf32> to vector<4x8x8xf32>
    %123 = arith.mulf %120, %122 : vector<4x8x8xf32>
    %cst_31 = arith.constant dense<0.000000e+00> : vector<4x8xf32>
    %124 = vector.multi_reduction <add>, %123, %cst_31 [2] : vector<4x8x8xf32> to vector<4x8xf32>
    %125 = vector.shape_cast %124 : vector<4x8xf32> to vector<4x8x1xf32>
    %cst_32 = arith.constant 1.000000e-30 : f32
    %126 = vector.broadcast %cst_32 : f32 to vector<4x8x1xf32>
    %127 = arith.maximumf %125, %126 : vector<4x8x1xf32>
    %128 = vector.broadcast %127 : vector<4x8x1xf32> to vector<4x8x8xf32>
    %129 = arith.divf %123, %128 : vector<4x8x8xf32>
    %130 = vector.shape_cast %129 : vector<4x8x8xf32> to vector<32x8xf32>
    %cst_33 = arith.constant dense<0.000000e+00> : vector<32x64xf32>
    %131 = tpu.matmul %130, %80, %cst_33 {dimension_numbers = #tpu.dot_dimension_numbers<[1], [0], [0], [1], [0, 0, 1, 1], [], []>} : vector<32x8xf32>, vector<8x64xf32>, vector<32x64xf32> -> vector<32x64xf32>
    %132 = arith.addf %131, %7 : vector<32x64xf32>
    %cst_34 = arith.constant 0.000000e+00 : f32
    %133 = vector.broadcast %cst_34 : f32 to vector<32x64xf32>
    %134 = arith.maximumf %132, %133 : vector<32x64xf32>
    %135 = vector.extract_strided_slice %134 {offsets = [0, 0], sizes = [8, 64], strides = [1, 1]} : vector<32x64xf32> to vector<8x64xf32>
    %136 = vector.extract_strided_slice %134 {offsets = [8, 0], sizes = [8, 64], strides = [1, 1]} : vector<32x64xf32> to vector<8x64xf32>
    %137 = arith.addf %135, %136 : vector<8x64xf32>
    %138 = vector.extract_strided_slice %134 {offsets = [16, 0], sizes = [8, 64], strides = [1, 1]} : vector<32x64xf32> to vector<8x64xf32>
    %139 = arith.addf %137, %138 : vector<8x64xf32>
    %140 = vector.extract_strided_slice %134 {offsets = [24, 0], sizes = [8, 64], strides = [1, 1]} : vector<32x64xf32> to vector<8x64xf32>
    %141 = arith.addf %139, %140 : vector<8x64xf32>
    %cst_35 = arith.constant 2.500000e-01 : f32
    %142 = vector.broadcast %cst_35 : f32 to vector<8x64xf32>
    %143 = arith.mulf %141, %142 : vector<8x64xf32>
    %144 = tpu.concatenate %143, %80 in 1 : vector<8x64xf32>, vector<8x64xf32> -> vector<8x128xf32>
    %cst_36 = arith.constant dense<0.000000e+00> : vector<8x128xf32>
    %145 = tpu.matmul %144, %8, %cst_36 {dimension_numbers = #tpu.dot_dimension_numbers<[1], [0], [0], [1], [0, 0, 1, 1], [], []>} : vector<8x128xf32>, vector<128x128xf32>, vector<8x128xf32> -> vector<8x128xf32>
    %146 = vector.broadcast %9 : vector<1x128xf32> to vector<8x128xf32>
    %147 = arith.addf %145, %146 : vector<8x128xf32>
    %c0_37 = arith.constant 0 : index
    %c0_38 = arith.constant 0 : index
    %148 = vector.load %arg6[%c0_37, %c0_38] : memref<8x128xf32, #tpu.memory_space<vmem>>, vector<8x128xf32>
    tpu.vector_store %arg6[%c0_37, %c0_38], %147 {strides = array<i32>} : memref<8x128xf32, #tpu.memory_space<vmem>>, vector<8x128xf32>,
    return
  }
  func.func @transform_0(%arg0: i32) -> (i32, i32) {
    %c0_i32 = arith.constant 0 : i32
    %c0_i32_0 = arith.constant 0 : i32
    return %arg0, %c0_i32 : i32, i32
  }
  func.func @transform_1(%arg0: i32) -> (i32, i32) {
    %c0_i32 = arith.constant 0 : i32
    %c0_i32_0 = arith.constant 0 : i32
    return %arg0, %c0_i32 : i32, i32
  }
  func.func @transform_2(%arg0: i32) -> (i32, i32) {
    %c0_i32 = arith.constant 0 : i32
    %c0_i32_0 = arith.constant 0 : i32
    return %arg0, %c0_i32 : i32, i32
  }
  func.func @transform_3(%arg0: i32) -> (i32, i32) {
    %c0_i32 = arith.constant 0 : i32
    %c0_i32_0 = arith.constant 0 : i32
    return %arg0, %c0_i32 : i32, i32
  }
  func.func @transform_4(%arg0: i32) -> (i32, i32) {
    %c0_i32 = arith.constant 0 : i32
    %c0_i32_0 = arith.constant 0 : i32
    %c0_i32_1 = arith.constant 0 : i32
    return %c0_i32, %c0_i32_0 : i32, i32
  }
  func.func @transform_5(%arg0: i32) -> (i32, i32) {
    %c0_i32 = arith.constant 0 : i32
    %c0_i32_0 = arith.constant 0 : i32
    return %arg0, %c0_i32 : i32, i32
  }
}

</mosaic_0001>

<llo_original>
// kernel: sagnn_forward.1
$region0: #{sagnn_forward.1}
  #allocation0 [shape = 'u32[]', space=smem, size = 0x4, offset = 0x4, fixed_abs, tag = 'smem constant byte address 0x4 - core index']
  #allocation1 [shape = 'u32[144,128]{1,0:T(1,128)}', space=vmem, size = 0x12000, scoped, tag = 'internal scratch']
  %s0 = inlined_call_operand.vmem [shape: f32[224,48], index: 0, kind: input, shape index: {}]
  %s1 = inlined_call_operand.vmem [shape: f32[224,64], index: 1, kind: input, shape index: {}]
  %s2 = inlined_call_operand.vmem [shape: f32[32,100], index: 2, kind: input, shape index: {}]
  %s3 = inlined_call_operand.vmem [shape: f32[32,8], index: 3, kind: input, shape index: {}]
  %s4 = inlined_call_operand.vmem [shape: f32[472,256], index: 4, kind: input, shape index: {}]
  %s5 = inlined_call_operand.vmem [shape: f32[32,128], index: 5, kind: output, shape index: {}]
  %s6 = sld [smem:[#allocation0]]
  $region53: #{sagnn_forward.1} parent=0
    _
  %s8 = ssub.s32 1, %s6
  %s9 = scalar_select 0, %s8, %s6
  loop: start=0, step=1, limit=6
  $region2: #{sagnn_forward.1} parent=0 // loop_pre_header
    _
  $region3: #{sagnn_forward.1} parent=0 // loop_header
    %s11 = sphi 0, %s15
    %p12 = scmp.ge.s32.totalorder %s11, 6
    %s21 = sphi 0, %s23
    %s24 = sphi 0, %s21
    %s25 = sphi 0, %s24
    %s41 = sphi 0, %s25
    %s47 = sphi 0, %s49
    %s50 = sphi 0, %s47
    %s51 = sphi 0, %s50
    %s67 = sphi 0, %s51
    %s73 = sphi 0, %s75
    %s76 = sphi 0, %s73
    %s77 = sphi 0, %s76
    %s93 = sphi 0, %s77
    %s99 = sphi 0, %s101
    %s102 = sphi 0, %s99
    %s103 = sphi 0, %s102
    %s119 = sphi 0, %s103
    %s123 = sphi 0, %s123
    %s125 = sphi 0, %s123
    %s126 = sphi 0, %s125
    %s140 = sphi 0, %s126
    %s146 = sphi 0, %s148
    %s149 = sphi 0, %s146
    %s150 = sphi 0, %s149
    %s166 = sphi 0, %s150
  $region4: #{sagnn_forward.1} parent=0 // loop_header_branch
    %14 = sbr.rel (%p12) target = $region8
  $region5: #{sagnn_forward.1} parent=0 // loop_body
    %s16 = ssub.s32 %s11, 1
    %s17 = ssub.s32 %s11, 2
    %s18 = sadd.s32 %s11, 1
    %s19 = ssub.s32 %s11, %s18
    %p20 = scmp.eq.s32.totalorder %s19, 0
    %s22 = sadd.s32 %s21, 1
    %s23 = scalar_select %p20, %s21, %s22
    %p26 = pneg %p20
    %p27 = scmp.eq.s32.totalorder %s11, 3
    %p28 = por %p26, %p27
    %p29 = scmp.ne.s32.totalorder %s21, %s24
    %p30 = scmp.eq.s32.totalorder %s11, 0
    %p31 = por %p29, %p30
    %p32 = scmp.ne.s32.totalorder %s21, %s24
    %p33 = scmp.eq.s32.totalorder %s16, 3
    %p34 = por %p32, %p33
    %p35 = scmp.ne.s32.totalorder %s24, %s25
    %p36 = scmp.eq.s32.totalorder %s16, 0
    %p37 = por %p35, %p36
    %p38 = scmp.ne.s32.totalorder %s24, %s25
    %p39 = scmp.eq.s32.totalorder %s17, 3
    %p40 = por %p38, %p39
    %p42 = scmp.ne.s32.totalorder %s25, %s41
    %p43 = scmp.eq.s32.totalorder %s17, 0
    %p44 = por %p42, %p43
    %s45 = ssub.s32 %s11, %s18
    %p46 = scmp.eq.s32.totalorder %s45, 0
    %s48 = sadd.s32 %s47, 1
    %s49 = scalar_select %p46, %s47, %s48
    %p52 = pneg %p46
    %p53 = scmp.eq.s32.totalorder %s11, 3
    %p54 = por %p52, %p53
    %p55 = scmp.ne.s32.totalorder %s47, %s50
    %p56 = scmp.eq.s32.totalorder %s11, 0
    %p57 = por %p55, %p56
    %p58 = scmp.ne.s32.totalorder %s47, %s50
    %p59 = scmp.eq.s32.totalorder %s16, 3
    %p60 = por %p58, %p59
    %p61 = scmp.ne.s32.totalorder %s50, %s51
    %p62 = scmp.eq.s32.totalorder %s16, 0
    %p63 = por %p61, %p62
    %p64 = scmp.ne.s32.totalorder %s50, %s51
    %p65 = scmp.eq.s32.totalorder %s17, 3
    %p66 = por %p64, %p65
    %p68 = scmp.ne.s32.totalorder %s51, %s67
    %p69 = scmp.eq.s32.totalorder %s17, 0
    %p70 = por %p68, %p69
    %s71 = ssub.s32 %s11, %s18
    %p72 = scmp.eq.s32.totalorder %s71, 0
    %s74 = sadd.s32 %s73, 1
    %s75 = scalar_select %p72, %s73, %s74
    %p78 = pneg %p72
    %p79 = scmp.eq.s32.totalorder %s11, 3
    %p80 = por %p78, %p79
    %p81 = scmp.ne.s32.totalorder %s73, %s76
    %p82 = scmp.eq.s32.totalorder %s11, 0
    %p83 = por %p81, %p82
    %p84 = scmp.ne.s32.totalorder %s73, %s76
    %p85 = scmp.eq.s32.totalorder %s16, 3
    %p86 = por %p84, %p85
    %p87 = scmp.ne.s32.totalorder %s76, %s77
    %p88 = scmp.eq.s32.totalorder %s16, 0
    %p89 = por %p87, %p88
    %p90 = scmp.ne.s32.totalorder %s76, %s77
    %p91 = scmp.eq.s32.totalorder %s17, 3
    %p92 = por %p90, %p91
    %p94 = scmp.ne.s32.totalorder %s77, %s93
    %p95 = scmp.eq.s32.totalorder %s17, 0
    %p96 = por %p94, %p95
    %s97 = ssub.s32 %s11, %s18
    %p98 = scmp.eq.s32.totalorder %s97, 0
    %s100 = sadd.s32 %s99, 1
    %s101 = scalar_select %p98, %s99, %s100
    %p104 = pneg %p98
    %p105 = scmp.eq.s32.totalorder %s11, 3
    %p106 = por %p104, %p105
    %p107 = scmp.ne.s32.totalorder %s99, %s102
    %p108 = scmp.eq.s32.totalorder %s11, 0
    %p109 = por %p107, %p108
    %p110 = scmp.ne.s32.totalorder %s99, %s102
    %p111 = scmp.eq.s32.totalorder %s16, 3
    %p112 = por %p110, %p111
    %p113 = scmp.ne.s32.totalorder %s102, %s103
    %p114 = scmp.eq.s32.totalorder %s16, 0
    %p115 = por %p113, %p114
    %p116 = scmp.ne.s32.totalorder %s102, %s103
    %p117 = scmp.eq.s32.totalorder %s17, 3
    %p118 = por %p116, %p117
    %p120 = scmp.ne.s32.totalorder %s103, %s119
    %p121 = scmp.eq.s32.totalorder %s17, 0
    %p122 = por %p120, %p121
    %s124 = sadd.s32 %s123, 1
    %p127 = scmp.eq.s32.totalorder %s11, 3
    %p128 = scmp.ne.s32.totalorder %s123, %s125
    %p129 = scmp.eq.s32.totalorder %s11, 0
    %p130 = por %p128, %p129
    %p131 = scmp.ne.s32.totalorder %s123, %s125
    %p132 = scmp.eq.s32.totalorder %s16, 3
    %p133 = por %p131, %p132
    %p134 = scmp.ne.s32.totalorder %s125, %s126
    %p135 = scmp.eq.s32.totalorder %s16, 0
    %p136 = por %p134, %p135
    %p137 = scmp.ne.s32.totalorder %s125, %s126
    %p138 = scmp.eq.s32.totalorder %s17, 3
    %p139 = por %p137, %p138
    %p141 = scmp.ne.s32.totalorder %s126, %s140
    %p142 = scmp.eq.s32.totalorder %s17, 0
    %p143 = por %p141, %p142
    %s144 = ssub.s32 %s11, %s18
    %p145 = scmp.eq.s32.totalorder %s144, 0
    %s147 = sadd.s32 %s146, 1
    %s148 = scalar_select %p145, %s146, %s147
    %p151 = pneg %p145
    %p152 = scmp.eq.s32.totalorder %s11, 3
    %p153 = por %p151, %p152
    %p154 = scmp.ne.s32.totalorder %s146, %s149
    %p155 = scmp.eq.s32.totalorder %s11, 0
    %p156 = por %p154, %p155
    %p157 = scmp.ne.s32.totalorder %s146, %s149
    %p158 = scmp.eq.s32.totalorder %s16, 3
    %p159 = por %p157, %p158
    %p160 = scmp.ne.s32.totalorder %s149, %s150
    %p161 = scmp.eq.s32.totalorder %s16, 0
    %p162 = por %p160, %p161
    %p163 = scmp.ne.s32.totalorder %s149, %s150
    %p164 = scmp.eq.s32.totalorder %s17, 3
    %p165 = por %p163, %p164
    %p167 = scmp.ne.s32.totalorder %s150, %s166
    %p168 = scmp.eq.s32.totalorder %s17, 0
    %p169 = por %p167, %p168
    %p170 = scmp.le.s32.totalorder 1, %s11
    %p171 = scmp.lt.s32.totalorder %s11, 5
    %p172 = pnand %p170, %p171
    %p173 = pneg %p172
    // Predicated region
    $region9: #{sagnn_forward.1} parent=5 // pred_check
      _
    $region10: #{sagnn_forward.1} parent=5 // pred_check_branch
      %175 = sbr.rel (%p172) target = $region12
    $region11: #{sagnn_forward.1} parent=5 // pred_region
      %s176 = ssub.s32 %s11, 1
      // Predicated region
      $region13: #{sagnn_forward.1} parent=11 // pred_check
        %p177 = pneg %p136
      $region14: #{sagnn_forward.1} parent=11 // pred_check_branch
        %179 = sbr.rel (%p177) target = $region16
      $region15: #{sagnn_forward.1} parent=11 // pred_region
        _
      $region16: #{sagnn_forward.1} parent=11 // pred_fallthru
        _
    $region12: #{sagnn_forward.1} parent=5 // pred_fallthru
      _
    %p180 = scmp.lt.s32.totalorder %s11, 4
    // Predicated region
    $region17: #{sagnn_forward.1} parent=5 // pred_check
      %p181 = pneg %p180
    $region18: #{sagnn_forward.1} parent=5 // pred_check_branch
      %183 = sbr.rel (%p181) target = $region20
    $region19: #{sagnn_forward.1} parent=5 // pred_region
      // Predicated region
      $region21: #{sagnn_forward.1} parent=19 // pred_check
        %p184 = pneg %p31
      $region22: #{sagnn_forward.1} parent=19 // pred_check_branch
        %186 = sbr.rel (%p184) target = $region24
      $region23: #{sagnn_forward.1} parent=19 // pred_region
        %s187 = smul.u32 7, %s11
        %p188 = scmp.lt.s32.totalorder %s187, 27
        %s189 = scalar_select %p188, %s187, 27
        %s190 = smul.addr %s189, 8
        %s191 = scalar_lea.vmem %s0, %s190
        %s192 = smul.u32 7, %s11
      $region24: #{sagnn_forward.1} parent=19 // pred_fallthru
        _
      // Predicated region
      $region25: #{sagnn_forward.1} parent=19 // pred_check
        %p193 = pneg %p57
      $region26: #{sagnn_forward.1} parent=19 // pred_check_branch
        %195 = sbr.rel (%p193) target = $region28
      $region27: #{sagnn_forward.1} parent=19 // pred_region
        %s196 = smul.u32 7, %s11
        %p197 = scmp.lt.s32.totalorder %s196, 27
        %s198 = scalar_select %p197, %s196, 27
        %s199 = smul.addr %s198, 8
        %s200 = scalar_lea.vmem %s1, %s199
        %s201 = smul.u32 7, %s11
      $region28: #{sagnn_forward.1} parent=19 // pred_fallthru
        _
      // Predicated region
      $region29: #{sagnn_forward.1} parent=19 // pred_check
        %p202 = pneg %p83
      $region30: #{sagnn_forward.1} parent=19 // pred_check_branch
        %204 = sbr.rel (%p202) target = $region32
      $region31: #{sagnn_forward.1} parent=19 // pred_region
        %p205 = scmp.lt.s32.totalorder %s11, 3
        %s206 = scalar_select %p205, %s11, 3
        %s207 = smul.addr %s206, 8
        %s208 = scalar_lea.vmem %s2, %s207
      $region32: #{sagnn_forward.1} parent=19 // pred_fallthru
        _
      // Predicated region
      $region33: #{sagnn_forward.1} parent=19 // pred_check
        %p209 = pneg %p109
      $region34: #{sagnn_forward.1} parent=19 // pred_check_branch
        %211 = sbr.rel (%p209) target = $region36
      $region35: #{sagnn_forward.1} parent=19 // pred_region
        %p212 = scmp.lt.s32.totalorder %s11, 3
        %s213 = scalar_select %p212, %s11, 3
        %s214 = smul.addr %s213, 8
        %s215 = scalar_lea.vmem %s3, %s214
      $region36: #{sagnn_forward.1} parent=19 // pred_fallthru
        _
    $region20: #{sagnn_forward.1} parent=5 // pred_fallthru
      _
    %p216 = scmp.le.s32.totalorder 1, %s11
    %p217 = scmp.lt.s32.totalorder %s11, 5
    %p218 = pnand %p216, %p217
    %p219 = pneg %p218
    // Predicated region
    $region37: #{sagnn_forward.1} parent=5 // pred_check
      _
    $region38: #{sagnn_forward.1} parent=5 // pred_check_branch
      %221 = sbr.rel (%p218) target = $region40
    $region39: #{sagnn_forward.1} parent=5 // pred_region
      %s222 = ssub.s32 %s11, 1
      %s223 = smul.u32 7, %s16
      %p224 = scmp.lt.s32.totalorder %s223, 27
      %s225 = scalar_select %p224, %s223, 27
      %s226 = smul.addr %s225, 8
      %s227 = scalar_lea.vmem %s0, %s226
      %p228 = pneg %p37
      %p229 = pneg %p34
      %s230 = smul.u32 7, %s16
      %p231 = scmp.lt.s32.totalorder %s230, 27
      %s232 = scalar_select %p231, %s230, 27
      %s233 = smul.addr %s232, 8
      %s234 = scalar_lea.vmem %s1, %s233
      %p235 = pneg %p63
      %p236 = pneg %p60
      %p237 = scmp.lt.s32.totalorder %s16, 3
      %s238 = scalar_select %p237, %s16, 3
      %s239 = smul.addr %s238, 8
      %s240 = scalar_lea.vmem %s2, %s239
      %p241 = pneg %p89
      %p242 = pneg %p86
      %p243 = scmp.lt.s32.totalorder %s16, 3
      %s244 = scalar_select %p243, %s16, 3
      %s245 = smul.addr %s244, 8
      %s246 = scalar_lea.vmem %s3, %s245
      %p247 = pneg %p115
      %p248 = pneg %p112
      %p249 = pneg %p136
      %p250 = pneg %p133
      %p251 = pneg %p162
      %p252 = pneg %p159
      %p253 = scmp.lt.s32.totalorder %s16, 3
      %s254 = scalar_select %p253, %s16, 3
      %s255 = smul.addr %s254, 8
      %s256 = scalar_lea.vmem %s5, %s255
      %s257 = smul.u32 7, %s16
      %p258 = scmp.lt.s32.totalorder %s257, 27
      %s259 = scalar_select %p258, %s257, 27
      %s260 = smul.addr %s259, 8
      %s261 = scalar_lea.vmem %s0, %s260
      %s262 = smul.u32 7, %s16
      %s263 = smul.u32 7, %s16
      %p264 = scmp.lt.s32.totalorder %s263, 27
      %s265 = scalar_select %p264, %s263, 27
      %s266 = smul.addr %s265, 8
      %s267 = scalar_lea.vmem %s1, %s266
      %s268 = smul.u32 7, %s16
      %p269 = scmp.lt.s32.totalorder %s16, 3
      %s270 = scalar_select %p269, %s16, 3
      %s271 = smul.addr %s270, 8
      %s272 = scalar_lea.vmem %s2, %s271
      %p273 = scmp.lt.s32.totalorder %s16, 3
      %s274 = scalar_select %p273, %s16, 3
      %s275 = smul.addr %s274, 8
      %s276 = scalar_lea.vmem %s3, %s275
      %p277 = scmp.lt.s32.totalorder %s16, 3
      %s278 = scalar_select %p277, %s16, 3
      %s279 = smul.addr %s278, 8
      %s280 = scalar_lea.vmem %s5, %s279
      %v281 = vld [vmem:[%s4] sm:$0xff]
      %v282 = vld [vmem:[%s4 + $0x8] sm:$0xff]
      %v283 = vld [vmem:[%s4 + $0x10] sm:$0xff]
      %v284 = vld [vmem:[%s4 + $0x18] sm:$0xff]
      %v285 = vld [vmem:[%s4 + $0x20] sm:$0xff]
      %v286 = vld [vmem:[%s4 + $0x28] sm:$0xff]
      %v287 = vld [vmem:[%s4 + $0x30] sm:$0xff]
      %v288 = vld [vmem:[%s4 + $0x38] sm:$0xff]
      %v289 = vld [vmem:[%s4 + $0x40] sm:$0xff]
      %v290 = vld [vmem:[%s4 + $0x48] sm:$0xff]
      %v291 = vld [vmem:[%s4 + $0x50] sm:$0xff]
      %v292 = vld [vmem:[%s4 + $0x58] sm:$0xff]
      %s293 = scalar_lea.vmem %s4, 96
      %v294 = vld [vmem:[%s293] ss:$8 sm:$0x3]
      %v295 = vld [vmem:[%s4 + $0x70] sm:$0xff]
      %v296 = vld [vmem:[%s4 + $0x78] sm:$0xff]
      %v297 = vld [vmem:[%s4 + $0x80] sm:$0xff]
      %v298 = vld [vmem:[%s4 + $0x88] sm:$0xff]
      %v299 = vld [vmem:[%s4 + $0x90] sm:$0xff]
      %v300 = vld [vmem:[%s4 + $0x98] sm:$0xff]
      %v301 = vld [vmem:[%s4 + $0xa0] sm:$0xff]
      %v302 = vld [vmem:[%s4 + $0xa8] sm:$0xff]
      %v303 = vld [vmem:[%s4 + $0xb0] sm:$0xff]
      %v304 = vld [vmem:[%s4 + $0xb8] sm:$0xff]
      %v305 = vld [vmem:[%s4 + $0xc0] sm:$0xff]
      %v306 = vld [vmem:[%s4 + $0xc8] sm:$0xff]
      %v307 = vld [vmem:[%s4 + $0xd0] sm:$0xff]
      %v308 = vld [vmem:[%s4 + $0xd8] sm:$0xff]
      %v309 = vld [vmem:[%s4 + $0xe0] sm:$0xff]
      %v310 = vld [vmem:[%s4 + $0xe8] sm:$0xff]
      %v311 = vld [vmem:[%s4 + $0xf0] sm:$0xff]
      %v312 = vld [vmem:[%s4 + $0x100] sm:$0xff]
      %v313 = vld [vmem:[%s4 + $0x110] sm:$0xff]
      %v314 = vld [vmem:[%s4 + $0x120] sm:$0xff]
      %v315 = vld [vmem:[%s4 + $0x130] sm:$0xff]
      %v316 = vld [vmem:[%s4 + $0x140] sm:$0xff]
      %v317 = vld [vmem:[%s4 + $0x150] sm:$0xff]
      %v318 = vld [vmem:[%s4 + $0x160] sm:$0xff]
      %v319 = vld [vmem:[%s4 + $0x170] ss:$0 sm:$0xff]
      %v320 = vld [vmem:[%s4 + $0x180] sm:$0xff]
      %v321 = vld [vmem:[%s4 + $0x188] sm:$0xff]
      %v322 = vld [vmem:[%s4 + $0x190] sm:$0xff]
      %v323 = vld [vmem:[%s4 + $0x198] sm:$0xff]
      %v324 = vld [vmem:[%s4 + $0x1a0] sm:$0xff]
      %v325 = vld [vmem:[%s4 + $0x1a8] sm:$0xff]
      %v326 = vld [vmem:[%s4 + $0x1b0] sm:$0xff]
      %v327 = vld [vmem:[%s4 + $0x1b8] sm:$0xff]
      %v328 = vld [vmem:[%s4 + $0x1c0] sm:$0xff]
      %v329 = vld [vmem:[%s4 + $0x1c8] sm:$0xff]
      %v330 = vld [vmem:[%s4 + $0x1d0] sm:$0xff]
      %v331 = vld [vmem:[%s4 + $0x1d8] sm:$0xff]
      %v332 = vld [vmem:[%s4 + $0x1e0] sm:$0xff]
      %v333 = vld [vmem:[%s4 + $0x1e8] sm:$0xff]
      %v334 = vld [vmem:[%s4 + $0x1f0] sm:$0xff]
      %v335 = vld [vmem:[%s4 + $0x1f8] sm:$0xff]
      %v336 = vld [vmem:[%s4 + $0x200] sm:$0xff]
      %v337 = vld [vmem:[%s4 + $0x208] sm:$0xff]
      %v338 = vld [vmem:[%s4 + $0x210] sm:$0xff]
      %v339 = vld [vmem:[%s4 + $0x218] sm:$0xff]
      %v340 = vld [vmem:[%s4 + $0x220] sm:$0xff]
      %v341 = vld [vmem:[%s4 + $0x228] sm:$0xff]
      %v342 = vld [vmem:[%s4 + $0x230] sm:$0xff]
      %v343 = vld [vmem:[%s4 + $0x238] sm:$0xff]
      %v344 = vld [vmem:[%s4 + $0x240] sm:$0xf]
      %v345 = vld [vmem:[%s4 + $0x248] sm:$0xf]
      %v346 = vld [vmem:[%s4 + $0x250] sm:$0xff]
      %v347 = vld [vmem:[%s4 + $0x258] sm:$0xff]
      %v348 = vld [vmem:[%s4 + $0x260] sm:$0xff]
      %v349 = vld [vmem:[%s4 + $0x270] sm:$0xff]
      %v350 = vld [vmem:[%s4 + $0x280] sm:$0xff]
      %v351 = vld [vmem:[%s4 + $0x290] sm:$0xff]
      %v352 = vld [vmem:[%s4 + $0x2a0] sm:$0xff]
      %v353 = vld [vmem:[%s4 + $0x2b0] sm:$0xff]
      %v354 = vld [vmem:[%s4 + $0x2c0] sm:$0xff]
      %v355 = vld [vmem:[%s4 + $0x2d0] sm:$0xff]
      %v356 = vld [vmem:[%s4 + $0x2e0] sm:$0xff]
      %v357 = vld [vmem:[%s4 + $0x2f0] sm:$0xff]
      %v358 = vld [vmem:[%s4 + $0x300] sm:$0xff]
      %v359 = vld [vmem:[%s4 + $0x310] sm:$0xff]
      %v360 = vld [vmem:[%s4 + $0x320] sm:$0xff]
      %v361 = vld [vmem:[%s4 + $0x330] sm:$0xff]
      %v362 = vld [vmem:[%s4 + $0x340] sm:$0xff]
      %v363 = vld [vmem:[%s4 + $0x350] sm:$0xff]
      %v364 = vld [vmem:[%s4 + $0x360] sm:$0xff]
      %v365 = vld [vmem:[%s4 + $0x370] sm:$0xff]
      %v366 = vld [vmem:[%s4 + $0x380] sm:$0xff]
      %v367 = vld [vmem:[%s4 + $0x390] sm:$0xff]
      %v368 = vld [vmem:[%s4 + $0x3a0] ss:$0 sm:$0xff]
      %v369 = vld [vmem:[%s261] sm:$0xff]
      %v370 = vld [vmem:[%s261 + $0x8] sm:$0xff]
      %v371 = vld [vmem:[%s261 + $0x10] sm:$0xff]
      %v372 = vld [vmem:[%s261 + $0x18] sm:$0xff]
      %v373 = vld [vmem:[%s261 + $0x20] sm:$0xff]
      %v374 = vld [vmem:[%s261 + $0x28] sm:$0xff]
      %v375 = vld [vmem:[%s261 + $0x30] sm:$0xff]
      %v377 = vlaneseq
      %v378 = vshrl.u32 %v377, 7
      %v379 = vsub.s32 0, %v378
      %v380 = vrot.slane %v294, %v379
      %v381 = vlaneseq
      %v382 = vshrl.u32 %v381, 7
      %v383 = vsub.s32 1, %v382
      %v384 = vrot.slane %v294, %v383
      %vm387 = vcmask 392192
      %v389 = vsel %vm387, %v369, 0
      %v392 = vsel %vm387, %v370, 0
      %v395 = vsel %vm387, %v371, 0
      %v398 = vsel %vm387, %v372, 0
      %v401 = vsel %vm387, %v373, 0
      %v404 = vsel %vm387, %v374, 0
      %v407 = vsel %vm387, %v375, 0
      %409 = vmatprep.subr.mxu0 %v282
      %410 = vmatpush1.msra.mxu0 %v281
      %411 = vmatprep.subr.mxu0 %v284
      %412 = vmatpush1.msra.mxu0 %v283
      %413 = vmatprep.subr.mxu0 %v286
      %414 = vmatpush1.msra.mxu0 %v285
      %415 = vmatprep.subr.mxu0 %v288
      %416 = vmatpush1.msra.mxu0 %v287
      %417 = vmatprep.subr.mxu0 %v290
      %418 = vmatpush1.msra.mxu0 %v289
      %419 = vmatprep.subr.mxu0 %v292
      %420 = vmatpush1.msra.mxu0 %v291
      %421 = vmatprep.subr.mxu0 0.0
      %422 = vmatpush1.msra.mxu0 0.0
      %423 = vmatprep.subr.mxu0 0.0
      %424 = vmatpush1.msra.mxu0 0.0
      %425 = vmatprep.subr.mxu0 0.0
      %426 = vmatpush1.msra.mxu0 0.0
      %427 = vmatprep.subr.mxu0 0.0
      %428 = vmatpush1.msra.mxu0 0.0
      %429 = vmatprep.subr.mxu0 0.0
      %430 = vmatpush1.msra.mxu0 0.0
      %431 = vmatprep.subr.mxu0 0.0
      %432 = vmatpush1.msra.mxu0 0.0
      %433 = vmatprep.subr.mxu0 0.0
      %434 = vmatpush1.msra.mxu0 0.0
      %435 = vmatprep.subr.mxu0 0.0
      %436 = vmatpush1.msra.mxu0 0.0
      %437 = vmatprep.subr.mxu0 0.0
      %438 = vmatpush1.msra.mxu0 0.0
      %439 = vmatprep.subr.mxu0 0.0
      %440 = vmatpush1.msra.mxu0 0.0
      %441 = vmatprep.subr.mxu0 0.0
      %442 = vmatpush1.msra.mxu0 0.0
      %443 = vmatprep.subr.mxu0 0.0
      %444 = vmatpush1.msra.mxu0 0.0
      %445 = vmatprep.subr.mxu0 0.0
      %446 = vmatpush1.msra.mxu0 0.0
      %447 = vmatprep.subr.mxu0 0.0
      %448 = vmatpush1.msra.mxu0 0.0
      %449 = vmatprep.subr.mxu0 0.0
      %450 = vmatpush1.msra.mxu0 0.0
      %451 = vmatprep.subr.mxu0 0.0
      %452 = vmatpush1.msra.mxu0 0.0
      %453 = vmatprep.subr.mxu0 0.0
      %454 = vmatpush1.msra.mxu0 0.0
      %455 = vmatprep.subr.mxu0 0.0
      %456 = vmatpush1.msra.mxu0 0.0
      %457 = vmatprep.subr.mxu0 0.0
      %458 = vmatpush1.msra.mxu0 0.0
      %459 = vmatprep.subr.mxu0 0.0
      %460 = vmatpush1.msra.mxu0 0.0
      %461 = vmatprep.subr.mxu0 0.0
      %462 = vmatpush1.msra.mxu0 0.0
      %463 = vmatprep.subr.mxu0 0.0
      %464 = vmatpush1.msra.mxu0 0.0
      %465 = vmatprep.subr.mxu0 0.0
      %466 = vmatpush1.msra.mxu0 0.0
      %467 = vmatprep.subr.mxu0 0.0
      %468 = vmatpush1.msra.mxu0 0.0
      %469 = vmatprep.subr.mxu0 0.0
      %470 = vmatpush1.msra.mxu0 0.0
      %471 = vmatprep.subr.mxu0 0.0
      %472 = vmatpush1.msra.mxu0 0.0
      %473 = vmatprep.mubr.f32.mxu0 0.0
      %474 = vmatmul.mubr.f32.gmra.mrb[0].mxu0 %v389
      %v475 = vpop.f32.mrb[0].mxu0
      %v476 = vadd.f32 %v380, %v475
      %v477 = vpop.f32.mrb[0].mxu0
      %v478 = vadd.f32 %v384, %v477
      %479 = vmatprep.mubr.f32.mxu0 0.0
      %480 = vmatmul.mubr.f32.gmra.mrb[0].mxu0 %v392
      %v481 = vpop.f32.mrb[0].mxu0
      %v482 = vadd.f32 %v380, %v481
      %v483 = vpop.f32.mrb[0].mxu0
      %v484 = vadd.f32 %v384, %v483
      %485 = vmatprep.mubr.f32.mxu0 0.0
      %486 = vmatmul.mubr.f32.gmra.mrb[0].mxu0 %v395
      %v487 = vpop.f32.mrb[0].mxu0
      %v488 = vadd.f32 %v380, %v487
      %v489 = vpop.f32.mrb[0].mxu0
      %v490 = vadd.f32 %v384, %v489
      %491 = vmatprep.mubr.f32.mxu0 0.0
      %492 = vmatmul.mubr.f32.gmra.mrb[0].mxu0 %v398
      %v493 = vpop.f32.mrb[0].mxu0
      %v494 = vadd.f32 %v380, %v493
      %v495 = vpop.f32.mrb[0].mxu0
      %v496 = vadd.f32 %v384, %v495
      %497 = vmatprep.mubr.f32.mxu0 0.0
      %498 = vmatmul.mubr.f32.gmra.mrb[0].mxu0 %v401
      %v499 = vpop.f32.mrb[0].mxu0
      %v500 = vadd.f32 %v380, %v499
      %v501 = vpop.f32.mrb[0].mxu0
      %v502 = vadd.f32 %v384, %v501
      %503 = vmatprep.mubr.f32.mxu0 0.0
      %504 = vmatmul.mubr.f32.gmra.mrb[0].mxu0 %v404
      %v505 = vpop.f32.mrb[0].mxu0
      %v506 = vadd.f32 %v380, %v505
      %v507 = vpop.f32.mrb[0].mxu0
      %v508 = vadd.f32 %v384, %v507
      %509 = vmatprep.mubr.f32.mxu0 0.0
      %510 = vmatmul.mubr.f32.gmra.mrb[0].mxu0 %v407
      %v511 = vpop.f32.mrb[0].mxu0
      %v512 = vadd.f32 %v380, %v511
      %v513 = vpop.f32.mrb[0].mxu0
      %v514 = vadd.f32 %v384, %v513
      %515 = vdwg.mxu0
      %v516 = vxor.u32 %v476, 2147483648
      %v517 = vxor.u32 %v482, 2147483648
      %v518 = vxor.u32 %v488, 2147483648
      %v519 = vxor.u32 %v494, 2147483648
      %v520 = vxor.u32 %v500, 2147483648
      %v521 = vxor.u32 %v506, 2147483648
      %v522 = vxor.u32 %v512, 2147483648
      %v523 = vmul.f32 %v516, 1.442695
      %v524 = vpow.pop %v523
      %v525 = vmul.f32 %v517, 1.442695
      %v526 = vpow.pop %v525
      %v527 = vmul.f32 %v518, 1.442695
      %v528 = vpow.pop %v527
      %v529 = vmul.f32 %v519, 1.442695
      %v530 = vpow.pop %v529
      %v531 = vmul.f32 %v520, 1.442695
      %v532 = vpow.pop %v531
      %v533 = vmul.f32 %v521, 1.442695
      %v534 = vpow.pop %v533
      %v535 = vmul.f32 %v522, 1.442695
      %v536 = vpow.pop %v535
      %v537 = vadd.f32 %v524, 1.0
      %v538 = vadd.f32 %v526, 1.0
      %v539 = vadd.f32 %v528, 1.0
      %v540 = vadd.f32 %v530, 1.0
      %v541 = vadd.f32 %v532, 1.0
      %v542 = vadd.f32 %v534, 1.0
      %v543 = vadd.f32 %v536, 1.0
      %v544 = vrcp.pop %v537
      %v545 = vmul.f32 1.0, %v544
      %v546 = vrcp.pop %v538
      %v547 = vmul.f32 1.0, %v546
      %v548 = vrcp.pop %v539
      %v549 = vmul.f32 1.0, %v548
      %v550 = vrcp.pop %v540
      %v551 = vmul.f32 1.0, %v550
      %v552 = vrcp.pop %v541
      %v553 = vmul.f32 1.0, %v552
      %v554 = vrcp.pop %v542
      %v555 = vmul.f32 1.0, %v554
      %v556 = vrcp.pop %v543
      %v557 = vmul.f32 1.0, %v556
      %v558 = vtanh.pop %v478
      %v559 = vtanh.pop %v484
      %v560 = vtanh.pop %v490
      %v561 = vtanh.pop %v496
      %v562 = vtanh.pop %v502
      %v563 = vtanh.pop %v508
      %v564 = vtanh.pop %v514
      %v565 = vmul.f32 %v545, %v558
      %v566 = vmul.f32 %v547, %v559
      %v567 = vmul.f32 %v549, %v560
      %v568 = vmul.f32 %v551, %v561
      %v569 = vmul.f32 %v553, %v562
      %v570 = vmul.f32 %v555, %v563
      %v571 = vmul.f32 %v557, %v564
      %v572 = vld [vmem:[%s267] sm:$0xff]
      %v573 = vld [vmem:[%s267 + $0x8] sm:$0xff]
      %v574 = vld [vmem:[%s267 + $0x10] sm:$0xff]
      %v575 = vld [vmem:[%s267 + $0x18] sm:$0xff]
      %v576 = vld [vmem:[%s267 + $0x20] sm:$0xff]
      %v577 = vld [vmem:[%s267 + $0x28] sm:$0xff]
      %v578 = vld [vmem:[%s267 + $0x30] sm:$0xff]
      %v579 = vadd.f32 %v565, %v572
      %v580 = vadd.f32 %v566, %v573
      %v581 = vadd.f32 %v567, %v574
      %v582 = vadd.f32 %v568, %v575
      %v583 = vadd.f32 %v569, %v576
      %v584 = vadd.f32 %v570, %v577
      %v585 = vadd.f32 %v571, %v578
      %v586 = vtanh.pop %v579
      %v587 = vtanh.pop %v580
      %v588 = vtanh.pop %v581
      %v589 = vtanh.pop %v582
      %v590 = vtanh.pop %v583
      %v591 = vtanh.pop %v584
      %v592 = vtanh.pop %v585
      %600 = vrot.lane.b32.xlu0 %v586, 64
      %v601 = vpop.permute.xlu0 %600
      %602 = vrot.lane.b32.xlu0 %v587, 64
      %v603 = vpop.permute.xlu0 %602
      %604 = vrot.lane.b32.xlu0 %v588, 64
      %v605 = vpop.permute.xlu0 %604
      %606 = vrot.lane.b32.xlu0 %v589, 64
      %v607 = vpop.permute.xlu0 %606
      %608 = vrot.lane.b32.xlu0 %v590, 64
      %v609 = vpop.permute.xlu0 %608
      %610 = vrot.lane.b32.xlu0 %v591, 64
      %v611 = vpop.permute.xlu0 %610
      %612 = vrot.lane.b32.xlu0 %v592, 64
      %v613 = vpop.permute.xlu0 %612
      %v621 = vmul.f32 %v545, %v601
      %v622 = vmul.f32 %v547, %v603
      %v623 = vmul.f32 %v549, %v605
      %v624 = vmul.f32 %v551, %v607
      %v625 = vmul.f32 %v553, %v609
      %v626 = vmul.f32 %v555, %v611
      %v627 = vmul.f32 %v557, %v613
      %635 = vrot.lane.b32.xlu0 %v621, 64
      %v636 = vpop.permute.xlu0 %635
      %637 = vrot.lane.b32.xlu0 %v622, 64
      %v638 = vpop.permute.xlu0 %637
      %639 = vrot.lane.b32.xlu0 %v623, 64
      %v640 = vpop.permute.xlu0 %639
      %641 = vrot.lane.b32.xlu0 %v624, 64
      %v642 = vpop.permute.xlu0 %641
      %643 = vrot.lane.b32.xlu0 %v625, 64
      %v644 = vpop.permute.xlu0 %643
      %645 = vrot.lane.b32.xlu0 %v626, 64
      %v646 = vpop.permute.xlu0 %645
      %647 = vrot.lane.b32.xlu0 %v627, 64
      %v648 = vpop.permute.xlu0 %647
      %vm649 = vcmask 523264
      %v650 = vsel %vm649, %v636, 0
      %v652 = vsel %vm649, %v638, 0
      %v654 = vsel %vm649, %v640, 0
      %v656 = vsel %vm649, %v642, 0
      %v658 = vsel %vm649, %v644, 0
      %v660 = vsel %vm649, %v646, 0
      %v662 = vsel %vm649, %v648, 0
      %664 = vmatprep.subr.mxu0 0.0
      %665 = vmatpush1.msra.mxu0 %v311
      %666 = vmatprep.subr.mxu0 0.0
      %667 = vmatpush1.msra.mxu0 %v312
      %668 = vmatprep.subr.mxu0 0.0
      %669 = vmatpush1.msra.mxu0 %v313
      %670 = vmatprep.subr.mxu0 0.0
      %671 = vmatpush1.msra.mxu0 %v314
      %672 = vmatprep.subr.mxu0 0.0
      %673 = vmatpush1.msra.mxu0 %v315
      %674 = vmatprep.subr.mxu0 0.0
      %675 = vmatpush1.msra.mxu0 %v316
      %676 = vmatprep.subr.mxu0 0.0
      %677 = vmatpush1.msra.mxu0 %v317
      %678 = vmatprep.subr.mxu0 0.0
      %679 = vmatpush1.msra.mxu0 %v318
      %680 = vmatprep.subr.mxu0 0.0
      %681 = vmatpush1.msra.mxu0 0.0
      %682 = vmatprep.subr.mxu0 0.0
      %683 = vmatpush1.msra.mxu0 0.0
      %684 = vmatprep.subr.mxu0 0.0
      %685 = vmatpush1.msra.mxu0 0.0
      %686 = vmatprep.subr.mxu0 0.0
      %687 = vmatpush1.msra.mxu0 0.0
      %688 = vmatprep.subr.mxu0 0.0
      %689 = vmatpush1.msra.mxu0 0.0
      %690 = vmatprep.subr.mxu0 0.0
      %691 = vmatpush1.msra.mxu0 0.0
      %692 = vmatprep.subr.mxu0 0.0
      %693 = vmatpush1.msra.mxu0 0.0
      %694 = vmatprep.subr.mxu0 0.0
      %695 = vmatpush1.msra.mxu0 0.0
      %696 = vmatprep.subr.mxu0 0.0
      %697 = vmatpush1.msra.mxu0 0.0
      %698 = vmatprep.subr.mxu0 0.0
      %699 = vmatpush1.msra.mxu0 0.0
      %700 = vmatprep.subr.mxu0 0.0
      %701 = vmatpush1.msra.mxu0 0.0
      %702 = vmatprep.subr.mxu0 0.0
      %703 = vmatpush1.msra.mxu0 0.0
      %704 = vmatprep.subr.mxu0 0.0
      %705 = vmatpush1.msra.mxu0 0.0
      %706 = vmatprep.subr.mxu0 0.0
      %707 = vmatpush1.msra.mxu0 0.0
      %708 = vmatprep.subr.mxu0 0.0
      %709 = vmatpush1.msra.mxu0 0.0
      %710 = vmatprep.subr.mxu0 0.0
      %711 = vmatpush1.msra.mxu0 0.0
      %712 = vmatprep.subr.mxu0 0.0
      %713 = vmatpush1.msra.mxu0 0.0
      %714 = vmatprep.subr.mxu0 0.0
      %715 = vmatpush1.msra.mxu0 0.0
      %716 = vmatprep.subr.mxu0 0.0
      %717 = vmatpush1.msra.mxu0 0.0
      %718 = vmatprep.subr.mxu0 0.0
      %719 = vmatpush1.msra.mxu0 0.0
      %720 = vmatprep.subr.mxu0 0.0
      %721 = vmatpush1.msra.mxu0 0.0
      %722 = vmatprep.subr.mxu0 0.0
      %723 = vmatpush1.msra.mxu0 0.0
      %724 = vmatprep.subr.mxu0 0.0
      %725 = vmatpush1.msra.mxu0 0.0
      %726 = vmatprep.subr.mxu0 0.0
      %727 = vmatpush1.msra.mxu0 0.0
      %728 = vmatprep.mubr.f32.mxu0 0.0
      %729 = vmatmul.mubr.f32.gmra.mrb[0].mxu0 %v650
      %v730 = vpop.f32.mrb[0].mxu0
      %v731 = vadd.f32 %v319, %v730
      %v732 = vpop.f32.mrb[0].mxu0
      %733 = vmatprep.mubr.f32.mxu0 0.0
      %734 = vmatmul.mubr.f32.gmra.mrb[0].mxu0 %v652
      %v735 = vpop.f32.mrb[0].mxu0
      %v736 = vadd.f32 %v319, %v735
      %v737 = vpop.f32.mrb[0].mxu0
      %738 = vmatprep.mubr.f32.mxu0 0.0
      %739 = vmatmul.mubr.f32.gmra.mrb[0].mxu0 %v654
      %v740 = vpop.f32.mrb[0].mxu0
      %v741 = vadd.f32 %v319, %v740
      %v742 = vpop.f32.mrb[0].mxu0
      %743 = vmatprep.mubr.f32.mxu0 0.0
      %744 = vmatmul.mubr.f32.gmra.mrb[0].mxu0 %v656
      %v745 = vpop.f32.mrb[0].mxu0
      %v746 = vadd.f32 %v319, %v745
      %v747 = vpop.f32.mrb[0].mxu0
      %748 = vmatprep.mubr.f32.mxu0 0.0
      %749 = vmatmul.mubr.f32.gmra.mrb[0].mxu0 %v658
      %v750 = vpop.f32.mrb[0].mxu0
      %v751 = vadd.f32 %v319, %v750
      %v752 = vpop.f32.mrb[0].mxu0
      %753 = vmatprep.mubr.f32.mxu0 0.0
      %754 = vmatmul.mubr.f32.gmra.mrb[0].mxu0 %v660
      %v755 = vpop.f32.mrb[0].mxu0
      %v756 = vadd.f32 %v319, %v755
      %v757 = vpop.f32.mrb[0].mxu0
      %758 = vmatprep.mubr.f32.mxu0 0.0
      %759 = vmatmul.mubr.f32.gmra.mrb[0].mxu0 %v662
      %v760 = vpop.f32.mrb[0].mxu0
      %v761 = vadd.f32 %v319, %v760
      %v762 = vpop.f32.mrb[0].mxu0
      %763 = vdwg.mxu0
      %v764 = vxor.u32 %v731, 2147483648
      %v765 = vxor.u32 %v736, 2147483648
      %v766 = vxor.u32 %v741, 2147483648
      %v767 = vxor.u32 %v746, 2147483648
      %v768 = vxor.u32 %v751, 2147483648
      %v769 = vxor.u32 %v756, 2147483648
      %v770 = vxor.u32 %v761, 2147483648
      %v771 = vmul.f32 %v764, 1.442695
      %v772 = vpow.pop %v771
      %v773 = vmul.f32 %v765, 1.442695
      %v774 = vpow.pop %v773
      %v775 = vmul.f32 %v766, 1.442695
      %v776 = vpow.pop %v775
      %v777 = vmul.f32 %v767, 1.442695
      %v778 = vpow.pop %v777
      %v779 = vmul.f32 %v768, 1.442695
      %v780 = vpow.pop %v779
      %v781 = vmul.f32 %v769, 1.442695
      %v782 = vpow.pop %v781
      %v783 = vmul.f32 %v770, 1.442695
      %v784 = vpow.pop %v783
      %v785 = vadd.f32 %v772, 1.0
      %v786 = vadd.f32 %v774, 1.0
      %v787 = vadd.f32 %v776, 1.0
      %v788 = vadd.f32 %v778, 1.0
      %v789 = vadd.f32 %v780, 1.0
      %v790 = vadd.f32 %v782, 1.0
      %v791 = vadd.f32 %v784, 1.0
      %v792 = vrcp.pop %v785
      %v793 = vmul.f32 1.0, %v792
      %v794 = vrcp.pop %v786
      %v795 = vmul.f32 1.0, %v794
      %v796 = vrcp.pop %v787
      %v797 = vmul.f32 1.0, %v796
      %v798 = vrcp.pop %v788
      %v799 = vmul.f32 1.0, %v798
      %v800 = vrcp.pop %v789
      %v801 = vmul.f32 1.0, %v800
      %v802 = vrcp.pop %v790
      %v803 = vmul.f32 1.0, %v802
      %v804 = vrcp.pop %v791
      %v805 = vmul.f32 1.0, %v804
      %v806 = vmul.f32 %v793, %v579
      %v807 = vmul.f32 %v795, %v580
      %v808 = vmul.f32 %v797, %v581
      %v809 = vmul.f32 %v799, %v582
      %v810 = vmul.f32 %v801, %v583
      %v811 = vmul.f32 %v803, %v584
      %v812 = vmul.f32 %v805, %v585
      %v813 = vadd.f32 %v621, %v622
      %v814 = vadd.f32 %v806, %v807
      %v815 = vadd.f32 %v813, %v623
      %v816 = vadd.f32 %v814, %v808
      %v817 = vadd.f32 %v815, %v624
      %v818 = vadd.f32 %v816, %v809
      %v819 = vadd.f32 %v817, %v625
      %v820 = vadd.f32 %v818, %v810
      %v821 = vadd.f32 %v819, %v626
      %v822 = vadd.f32 %v820, %v811
      %v823 = vadd.f32 %v821, %v627
      %v824 = vadd.f32 %v822, %v812
      %826 = vrot.lane.b32.xlu0 %v823, 64
      %v827 = vpop.permute.xlu0 %826
      %v828 = vsel %vm649, %v827, 0
      %830 = vmatprep.subr.mxu0 %v296
      %831 = vmatpush1.msra.mxu0 %v295
      %832 = vmatprep.subr.mxu0 %v298
      %833 = vmatpush1.msra.mxu0 %v297
      %834 = vmatprep.subr.mxu0 %v300
      %835 = vmatpush1.msra.mxu0 %v299
      %836 = vmatprep.subr.mxu0 %v302
      %837 = vmatpush1.msra.mxu0 %v301
      %838 = vmatprep.subr.mxu0 %v304
      %839 = vmatpush1.msra.mxu0 %v303
      %840 = vmatprep.subr.mxu0 %v306
      %841 = vmatpush1.msra.mxu0 %v305
      %842 = vmatprep.subr.mxu0 %v308
      %843 = vmatpush1.msra.mxu0 %v307
      %844 = vmatprep.subr.mxu0 %v310
      %845 = vmatpush1.msra.mxu0 %v309
      %846 = vmatprep.subr.mxu0 0.0
      %847 = vmatpush1.msra.mxu0 0.0
      %848 = vmatprep.subr.mxu0 0.0
      %849 = vmatpush1.msra.mxu0 0.0
      %850 = vmatprep.subr.mxu0 0.0
      %851 = vmatpush1.msra.mxu0 0.0
      %852 = vmatprep.subr.mxu0 0.0
      %853 = vmatpush1.msra.mxu0 0.0
      %854 = vmatprep.subr.mxu0 0.0
      %855 = vmatpush1.msra.mxu0 0.0
      %856 = vmatprep.subr.mxu0 0.0
      %857 = vmatpush1.msra.mxu0 0.0
      %858 = vmatprep.subr.mxu0 0.0
      %859 = vmatpush1.msra.mxu0 0.0
      %860 = vmatprep.subr.mxu0 0.0
      %861 = vmatpush1.msra.mxu0 0.0
      %862 = vmatprep.subr.mxu0 0.0
      %863 = vmatpush1.msra.mxu0 0.0
      %864 = vmatprep.subr.mxu0 0.0
      %865 = vmatpush1.msra.mxu0 0.0
      %866 = vmatprep.subr.mxu0 0.0
      %867 = vmatpush1.msra.mxu0 0.0
      %868 = vmatprep.subr.mxu0 0.0
      %869 = vmatpush1.msra.mxu0 0.0
      %870 = vmatprep.subr.mxu0 0.0
      %871 = vmatpush1.msra.mxu0 0.0
      %872 = vmatprep.subr.mxu0 0.0
      %873 = vmatpush1.msra.mxu0 0.0
      %874 = vmatprep.subr.mxu0 0.0
      %875 = vmatpush1.msra.mxu0 0.0
      %876 = vmatprep.subr.mxu0 0.0
      %877 = vmatpush1.msra.mxu0 0.0
      %878 = vmatprep.subr.mxu0 0.0
      %879 = vmatpush1.msra.mxu0 0.0
      %880 = vmatprep.subr.mxu0 0.0
      %881 = vmatpush1.msra.mxu0 0.0
      %882 = vmatprep.subr.mxu0 0.0
      %883 = vmatpush1.msra.mxu0 0.0
      %884 = vmatprep.subr.mxu0 0.0
      %885 = vmatpush1.msra.mxu0 0.0
      %886 = vmatprep.subr.mxu0 0.0
      %887 = vmatpush1.msra.mxu0 0.0
      %888 = vmatprep.subr.mxu0 0.0
      %889 = vmatpush1.msra.mxu0 0.0
      %890 = vmatprep.subr.mxu0 0.0
      %891 = vmatpush1.msra.mxu0 0.0
      %892 = vmatprep.subr.mxu0 0.0
      %893 = vmatpush1.msra.mxu0 0.0
      %894 = vmatprep.mubr.f32.mxu0 0.0
      %895 = vmatmul.mubr.f32.gmra.mrb[0].mxu0 %v828
      %v896 = vpop.f32.mrb[0].mxu0
      %v897 = vadd.f32 %v380, %v896
      %v898 = vpop.f32.mrb[0].mxu0
      %v899 = vadd.f32 %v384, %v898
      %900 = vdwg.mxu0
      %v901 = vxor.u32 %v897, 2147483648
      %v902 = vmul.f32 %v901, 1.442695
      %v903 = vpow.pop %v902
      %v904 = vadd.f32 %v903, 1.0
      %v905 = vrcp.pop %v904
      %v906 = vmul.f32 1.0, %v905
      %v907 = vtanh.pop %v899
      %v908 = vmul.f32 %v906, %v907
      %v909 = vadd.f32 %v908, %v824
      %v910 = vtanh.pop %v909
      %912 = vrot.lane.b32.xlu0 %v910, 64
      %v913 = vpop.permute.xlu0 %912
      %v915 = vmul.f32 %v906, %v913
      %v916 = vld [vmem:[%s272] sm:$0xff]
      %vm917 = vcmask 818176
      %v919 = vsel %vm917, %v916, 0
      %vm921 = vcmask 1043456
      %v923 = vsel %vm921, %v344, 0
      %v926 = vsel %vm921, %v345, 0
      %928 = vmatprep.subr.mxu0 %v321
      %929 = vmatpush1.msra.mxu0 %v320
      %930 = vmatprep.subr.mxu0 %v323
      %931 = vmatpush1.msra.mxu0 %v322
      %932 = vmatprep.subr.mxu0 %v325
      %933 = vmatpush1.msra.mxu0 %v324
      %934 = vmatprep.subr.mxu0 %v327
      %935 = vmatpush1.msra.mxu0 %v326
      %936 = vmatprep.subr.mxu0 %v329
      %937 = vmatpush1.msra.mxu0 %v328
      %938 = vmatprep.subr.mxu0 %v331
      %939 = vmatpush1.msra.mxu0 %v330
      %940 = vmatprep.subr.mxu0 %v333
      %941 = vmatpush1.msra.mxu0 %v332
      %942 = vmatprep.subr.mxu0 %v335
      %943 = vmatpush1.msra.mxu0 %v334
      %944 = vmatprep.subr.mxu0 %v337
      %945 = vmatpush1.msra.mxu0 %v336
      %946 = vmatprep.subr.mxu0 %v339
      %947 = vmatpush1.msra.mxu0 %v338
      %948 = vmatprep.subr.mxu0 %v341
      %949 = vmatpush1.msra.mxu0 %v340
      %950 = vmatprep.subr.mxu0 %v343
      %951 = vmatpush1.msra.mxu0 %v342
      %952 = vmatprep.subr.mxu0 %v926
      %953 = vmatpush1.msra.mxu0 %v923
      %954 = vmatprep.subr.mxu0 0.0
      %955 = vmatpush1.msra.mxu0 0.0
      %956 = vmatprep.subr.mxu0 0.0
      %957 = vmatpush1.msra.mxu0 0.0
      %958 = vmatprep.subr.mxu0 0.0
      %959 = vmatpush1.msra.mxu0 0.0
      %960 = vmatprep.subr.mxu0 0.0
      %961 = vmatpush1.msra.mxu0 0.0
      %962 = vmatprep.subr.mxu0 0.0
      %963 = vmatpush1.msra.mxu0 0.0
      %964 = vmatprep.subr.mxu0 0.0
      %965 = vmatpush1.msra.mxu0 0.0
      %966 = vmatprep.subr.mxu0 0.0
      %967 = vmatpush1.msra.mxu0 0.0
      %968 = vmatprep.subr.mxu0 0.0
      %969 = vmatpush1.msra.mxu0 0.0
      %970 = vmatprep.subr.mxu0 0.0
      %971 = vmatpush1.msra.mxu0 0.0
      %972 = vmatprep.subr.mxu0 0.0
      %973 = vmatpush1.msra.mxu0 0.0
      %974 = vmatprep.subr.mxu0 0.0
      %975 = vmatpush1.msra.mxu0 0.0
      %976 = vmatprep.subr.mxu0 0.0
      %977 = vmatpush1.msra.mxu0 0.0
      %978 = vmatprep.subr.mxu0 0.0
      %979 = vmatpush1.msra.mxu0 0.0
      %980 = vmatprep.subr.mxu0 0.0
      %981 = vmatpush1.msra.mxu0 0.0
      %982 = vmatprep.subr.mxu0 0.0
      %983 = vmatpush1.msra.mxu0 0.0
      %984 = vmatprep.subr.mxu0 0.0
      %985 = vmatpush1.msra.mxu0 0.0
      %986 = vmatprep.subr.mxu0 0.0
      %987 = vmatpush1.msra.mxu0 0.0
      %988 = vmatprep.subr.mxu0 0.0
      %989 = vmatpush1.msra.mxu0 0.0
      %990 = vmatprep.subr.mxu0 0.0
      %991 = vmatpush1.msra.mxu0 0.0
      %992 = vmatprep.mubr.f32.mxu0 0.0
      %993 = vmatmul.mubr.f32.gmra.mrb[0].mxu0 %v919
      %v994 = vpop.f32.mrb[0].mxu0
      %v995 = vadd.f32 0.0, %v994
      %v996 = vpop.f32.mrb[0].mxu0
      %v997 = vadd.f32 0.0, %v996
      %998 = vdwg.mxu0
      %999 = vmatprep.subr.mxu0 %v997
      %1000 = vmatpush1.xpose.msra.mxu0 %v995
      %1001 = vmatprep.subr.mxu0 0.0
      %1002 = vmatpush1.xpose.msra.mxu0 0.0
      %1003 = vmatprep.subr.mxu0 0.0
      %1004 = vmatpush1.xpose.msra.mxu0 0.0
      %1005 = vmatprep.subr.mxu0 0.0
      %1006 = vmatpush1.xpose.msra.mxu0 0.0
      %1007 = vmatprep.subr.mxu0 0.0
      %1008 = vmatpush1.xpose.msra.mxu0 0.0
      %1009 = vmatprep.subr.mxu0 0.0
      %1010 = vmatpush1.xpose.msra.mxu0 0.0
      %1011 = vmatprep.subr.mxu0 0.0
      %1012 = vmatpush1.xpose.msra.mxu0 0.0
      %1013 = vmatprep.subr.mxu0 0.0
      %1014 = vmatpush1.xpose.msra.mxu0 0.0
      %1015 = vmatprep.subr.mxu0 0.0
      %1016 = vmatpush1.xpose.msra.mxu0 0.0
      %1017 = vmatprep.subr.mxu0 0.0
      %1018 = vmatpush1.xpose.msra.mxu0 0.0
      %1019 = vmatprep.subr.mxu0 0.0
      %1020 = vmatpush1.xpose.msra.mxu0 0.0
      %1021 = vmatprep.subr.mxu0 0.0
      %1022 = vmatpush1.xpose.msra.mxu0 0.0
      %1023 = vmatprep.subr.mxu0 0.0
      %1024 = vmatpush1.xpose.msra.mxu0 0.0
      %1025 = vmatprep.subr.mxu0 0.0
      %1026 = vmatpush1.xpose.msra.mxu0 0.0
      %1027 = vmatprep.subr.mxu0 0.0
      %1028 = vmatpush1.xpose.msra.mxu0 0.0
      %1029 = vmatprep.subr.mxu0 0.0
      %1030 = vmatpush1.xpose.msra.mxu0 0.0
      %1031 = vmatprep.subr.mxu0 0.0
      %1032 = vmatpush1.xpose.msra.mxu0 0.0
      %1033 = vmatprep.subr.mxu0 0.0
      %1034 = vmatpush1.xpose.msra.mxu0 0.0
      %1035 = vmatprep.subr.mxu0 0.0
      %1036 = vmatpush1.xpose.msra.mxu0 0.0
      %1037 = vmatprep.subr.mxu0 0.0
      %1038 = vmatpush1.xpose.msra.mxu0 0.0
      %1039 = vmatprep.subr.mxu0 0.0
      %1040 = vmatpush1.xpose.msra.mxu0 0.0
      %1041 = vmatprep.subr.mxu0 0.0
      %1042 = vmatpush1.xpose.msra.mxu0 0.0
      %1043 = vmatprep.subr.mxu0 0.0
      %1044 = vmatpush1.xpose.msra.mxu0 0.0
      %1045 = vmatprep.subr.mxu0 0.0
      %1046 = vmatpush1.xpose.msra.mxu0 0.0
      %1047 = vmatprep.subr.mxu0 0.0
      %1048 = vmatpush1.xpose.msra.mxu0 0.0
      %1049 = vmatprep.subr.mxu0 0.0
      %1050 = vmatpush1.xpose.msra.mxu0 0.0
      %1051 = vmatprep.subr.mxu0 0.0
      %1052 = vmatpush1.xpose.msra.mxu0 0.0
      %1053 = vmatprep.subr.mxu0 0.0
      %1054 = vmatpush1.xpose.msra.mxu0 0.0
      %1055 = vmatprep.subr.mxu0 0.0
      %1056 = vmatpush1.xpose.msra.mxu0 0.0
      %1057 = vmatprep.subr.mxu0 0.0
      %1058 = vmatpush1.xpose.msra.mxu0 0.0
      %1059 = vmatprep.subr.mxu0 0.0
      %1060 = vmatpush1.xpose.msra.mxu0 0.0
      %1061 = vmatprep.subr.mxu0 0.0
      %1062 = vmatpush1.xpose.msra.mxu0 0.0
      %1063 = vmatprep.mubr.f32.mxu0 %v347
      %1064 = vmatmul.mubr.f32.gmra.mrb[0].mxu0 %v346
      %v1065 = vpop.f32.mrb[0].mxu0
      %v1066 = vadd.f32 0.0, %v1065
      %v1067 = vpop.f32.mrb[0].mxu0
      %1068 = vdwg.mxu0
      %v1071 = vunpack.c.l.s4 1966171168
      %v1072 = vunpack.c.0.s8 %v1071
      %v1073 = vlaneseq
      %v1074 = vshrl.u32 %v1073, 7
      %v1075 = vsub.s32 %v1072, %v1074
      %v1076 = vrot.slane %v1066, %v1075
      %v1077 = vcombine.high %v1076, %v1076
      %v1079 = vunpack.c.l.s4 1966171168
      %v1080 = vunpack.c.0.s8 %v1079
      %v1081 = vlaneseq
      %v1082 = vshrl.u32 %v1081, 7
      %v1083 = vsub.s32 %v1080, %v1082
      %v1084 = vrot.slane %v1076, %v1083
      %v1086 = vunpack.c.l.s4 1966171168
      %v1087 = vunpack.c.0.s8 %v1086
      %v1088 = vlaneseq
      %v1089 = vshrl.u32 %v1088, 7
      %v1090 = vsub.s32 %v1087, %v1089
      %v1091 = vrot.slane %v1077, %v1090
      %v1092 = vcombine.high %v1084, %v1084
      %v1093 = vcombine.high %v1091, %v1091
      %v1094 = vlaneseq
      %v1095 = vshrl.u32 %v1094, 7
      %v1096 = vsub.s32 0, %v1095
      %v1097 = vrot.slane %v1084, %v1096
      %v1098 = vlaneseq
      %v1099 = vshrl.u32 %v1098, 7
      %v1100 = vsub.s32 0, %v1099
      %v1101 = vrot.slane %v1091, %v1100
      %v1102 = vlaneseq
      %v1103 = vshrl.u32 %v1102, 7
      %v1104 = vsub.s32 0, %v1103
      %v1105 = vrot.slane %v1092, %v1104
      %v1106 = vlaneseq
      %v1107 = vshrl.u32 %v1106, 7
      %v1108 = vsub.s32 0, %v1107
      %v1109 = vrot.slane %v1093, %v1108
      %v1114 = vlaneseq
      %v1115 = vshrl.u32 %v1114, 7
      %v1116 = vlaneseq
      %v1117 = vand.u32 %v1116, 127
      %vm1118 = vcmp.eq.s32.totalorder %v1115, %v1117
      %v1119 = vsel %vm1118, 1, 0
      %v1120 = vcvt.s32.f32 %v1119
      %v1121 = vcombine.high %v1066, %v1066
      %v1123 = vunpack.c.l.s4 1966171168
      %v1124 = vunpack.c.0.s8 %v1123
      %v1125 = vlaneseq
      %v1126 = vshrl.u32 %v1125, 7
      %v1127 = vsub.s32 %v1124, %v1126
      %v1128 = vrot.slane %v1121, %v1127
      %v1129 = vcombine.high %v1128, %v1128
      %v1131 = vunpack.c.l.s4 1966171168
      %v1132 = vunpack.c.0.s8 %v1131
      %v1133 = vlaneseq
      %v1134 = vshrl.u32 %v1133, 7
      %v1135 = vsub.s32 %v1132, %v1134
      %v1136 = vrot.slane %v1128, %v1135
      %v1138 = vunpack.c.l.s4 1966171168
      %v1139 = vunpack.c.0.s8 %v1138
      %v1140 = vlaneseq
      %v1141 = vshrl.u32 %v1140, 7
      %v1142 = vsub.s32 %v1139, %v1141
      %v1143 = vrot.slane %v1129, %v1142
      %v1144 = vcombine.high %v1136, %v1136
      %v1145 = vcombine.high %v1143, %v1143
      %v1146 = vlaneseq
      %v1147 = vshrl.u32 %v1146, 7
      %v1148 = vsub.s32 0, %v1147
      %v1149 = vrot.slane %v1136, %v1148
      %v1150 = vlaneseq
      %v1151 = vshrl.u32 %v1150, 7
      %v1152 = vsub.s32 0, %v1151
      %v1153 = vrot.slane %v1143, %v1152
      %v1154 = vlaneseq
      %v1155 = vshrl.u32 %v1154, 7
      %v1156 = vsub.s32 0, %v1155
      %v1157 = vrot.slane %v1144, %v1156
      %v1158 = vlaneseq
      %v1159 = vshrl.u32 %v1158, 7
      %v1160 = vsub.s32 0, %v1159
      %v1161 = vrot.slane %v1145, %v1160
      %v1166 = vmul.f32 %v1149, %v1120
      %v1167 = vmul.f32 %v1153, %v1120
      %v1168 = vmul.f32 %v1157, %v1120
      %v1169 = vmul.f32 %v1161, %v1120
      %vm1170 = vcmask 64512
      %v1171 = vsel %vm1170, %v1166, 0.0
      %1172 = vadd.xlane.f32.xlu0 %v1171
      %v1173 = vpop.xlane.xlu0 %1172
      %v1174 = vsel %vm1170, %v1167, 0.0
      %1175 = vadd.xlane.f32.xlu0 %v1174
      %v1176 = vpop.xlane.xlu0 %1175
      %v1177 = vsel %vm1170, %v1168, 0.0
      %1178 = vadd.xlane.f32.xlu0 %v1177
      %v1179 = vpop.xlane.xlu0 %1178
      %v1180 = vsel %vm1170, %v1169, 0.0
      %1181 = vadd.xlane.f32.xlu0 %v1180
      %v1182 = vpop.xlane.xlu0 %1181
      %v1183 = vadd.f32 %v1097, %v1173
      %v1184 = vadd.f32 %v1101, %v1176
      %v1185 = vadd.f32 %v1105, %v1179
      %v1186 = vadd.f32 %v1109, %v1182
      %vm1187 = vcmp.gt.f32.partialorder %v1183, 0.0
      %vm1188 = vcmp.gt.f32.partialorder %v1184, 0.0
      %vm1189 = vcmp.gt.f32.partialorder %v1185, 0.0
      %vm1190 = vcmp.gt.f32.partialorder %v1186, 0.0
      %v1191 = vmul.f32 %v1183, 0.2
      %v1192 = vmul.f32 %v1184, 0.2
      %v1193 = vmul.f32 %v1185, 0.2
      %v1194 = vmul.f32 %v1186, 0.2
      %v1195 = vsel %vm1187, %v1183, %v1191
      %v1196 = vsel %vm1188, %v1184, %v1192
      %v1197 = vsel %vm1189, %v1185, %v1193
      %v1198 = vsel %vm1190, %v1186, %v1194
      %v1199 = vld [vmem:[%s276] sm:$0xff]
      %vm1200 = vcmp.gt.f32.partialorder %v1199, 0.0
      %v1201 = vsel %vm1200, 1, 0
      %vm1202 = vcmp.eq.s32.totalorder %v1201, 1
      %v1203 = vsel %vm1202, %v1195, -1e+30
      %v1204 = vsel %vm1202, %v1196, -1e+30
      %v1205 = vsel %vm1202, %v1197, -1e+30
      %v1206 = vsel %vm1202, %v1198, -1e+30
      %v1207 = vsel %vm1170, %v1203, -inf
      %1208 = vmax.xlane.f32.xlu0 %v1207
      %v1209 = vpop.xlane.xlu0 %1208
      %v1210 = vsel %vm1170, %v1204, -inf
      %1211 = vmax.xlane.f32.xlu0 %v1210
      %v1212 = vpop.xlane.xlu0 %1211
      %v1213 = vsel %vm1170, %v1205, -inf
      %1214 = vmax.xlane.f32.xlu0 %v1213
      %v1215 = vpop.xlane.xlu0 %1214
      %v1216 = vsel %vm1170, %v1206, -inf
      %1217 = vmax.xlane.f32.xlu0 %v1216
      %v1218 = vpop.xlane.xlu0 %1217
      %v1219 = vsub.f32 %v1203, %v1209
      %v1220 = vsub.f32 %v1204, %v1212
      %v1221 = vsub.f32 %v1205, %v1215
      %v1222 = vsub.f32 %v1206, %v1218
      %v1223 = vmul.f32 %v1219, 1.442695
      %v1224 = vpow.pop %v1223
      %v1225 = vmul.f32 %v1220, 1.442695
      %v1226 = vpow.pop %v1225
      %v1227 = vmul.f32 %v1221, 1.442695
      %v1228 = vpow.pop %v1227
      %v1229 = vmul.f32 %v1222, 1.442695
      %v1230 = vpow.pop %v1229
      %v1231 = vmul.f32 %v1224, %v1199
      %v1232 = vmul.f32 %v1226, %v1199
      %v1233 = vmul.f32 %v1228, %v1199
      %v1234 = vmul.f32 %v1230, %v1199
      %v1235 = vsel %vm1170, %v1231, 0.0
      %1236 = vadd.xlane.f32.xlu0 %v1235
      %v1237 = vpop.xlane.xlu0 %1236
      %v1238 = vsel %vm1170, %v1232, 0.0
      %1239 = vadd.xlane.f32.xlu0 %v1238
      %v1240 = vpop.xlane.xlu0 %1239
      %v1241 = vsel %vm1170, %v1233, 0.0
      %1242 = vadd.xlane.f32.xlu0 %v1241
      %v1243 = vpop.xlane.xlu0 %1242
      %v1244 = vsel %vm1170, %v1234, 0.0
      %1245 = vadd.xlane.f32.xlu0 %v1244
      %v1246 = vpop.xlane.xlu0 %1245
      %v1247 = vmax.f32 %v1237, 1e-30
      %v1248 = vmax.f32 %v1240, 1e-30
      %v1249 = vmax.f32 %v1243, 1e-30
      %v1250 = vmax.f32 %v1246, 1e-30
      %v1251 = vrcp.pop %v1247
      %v1252 = vmul.f32 %v1231, %v1251
      %v1253 = vrcp.pop %v1248
      %v1254 = vmul.f32 %v1232, %v1253
      %v1255 = vrcp.pop %v1249
      %v1256 = vmul.f32 %v1233, %v1255
      %v1257 = vrcp.pop %v1250
      %v1258 = vmul.f32 %v1234, %v1257
      %1260 = vrot.lane.b32.xlu0 %v915, 64
      %v1261 = vpop.permute.xlu0 %1260
      %v1264 = vsel %vm1170, %v1252, 0
      %v1267 = vsel %vm1170, %v1254, 0
      %v1270 = vsel %vm1170, %v1256, 0
      %v1273 = vsel %vm1170, %v1258, 0
      %1275 = vmatprep.subr.mxu0 0.0
      %1276 = vmatpush1.msra.mxu0 %v1261
      %1277 = vmatprep.subr.mxu0 0.0
      %1278 = vmatpush1.msra.mxu0 0.0
      %1279 = vmatprep.subr.mxu0 0.0
      %1280 = vmatpush1.msra.mxu0 0.0
      %1281 = vmatprep.subr.mxu0 0.0
      %1282 = vmatpush1.msra.mxu0 0.0
      %1283 = vmatprep.subr.mxu0 0.0
      %1284 = vmatpush1.msra.mxu0 0.0
      %1285 = vmatprep.subr.mxu0 0.0
      %1286 = vmatpush1.msra.mxu0 0.0
      %1287 = vmatprep.subr.mxu0 0.0
      %1288 = vmatpush1.msra.mxu0 0.0
      %1289 = vmatprep.subr.mxu0 0.0
      %1290 = vmatpush1.msra.mxu0 0.0
      %1291 = vmatprep.subr.mxu0 0.0
      %1292 = vmatpush1.msra.mxu0 0.0
      %1293 = vmatprep.subr.mxu0 0.0
      %1294 = vmatpush1.msra.mxu0 0.0
      %1295 = vmatprep.subr.mxu0 0.0
      %1296 = vmatpush1.msra.mxu0 0.0
      %1297 = vmatprep.subr.mxu0 0.0
      %1298 = vmatpush1.msra.mxu0 0.0
      %1299 = vmatprep.subr.mxu0 0.0
      %1300 = vmatpush1.msra.mxu0 0.0
      %1301 = vmatprep.subr.mxu0 0.0
      %1302 = vmatpush1.msra.mxu0 0.0
      %1303 = vmatprep.subr.mxu0 0.0
      %1304 = vmatpush1.msra.mxu0 0.0
      %1305 = vmatprep.subr.mxu0 0.0
      %1306 = vmatpush1.msra.mxu0 0.0
      %1307 = vmatprep.subr.mxu0 0.0
      %1308 = vmatpush1.msra.mxu0 0.0
      %1309 = vmatprep.subr.mxu0 0.0
      %1310 = vmatpush1.msra.mxu0 0.0
      %1311 = vmatprep.subr.mxu0 0.0
      %1312 = vmatpush1.msra.mxu0 0.0
      %1313 = vmatprep.subr.mxu0 0.0
      %1314 = vmatpush1.msra.mxu0 0.0
      %1315 = vmatprep.subr.mxu0 0.0
      %1316 = vmatpush1.msra.mxu0 0.0
      %1317 = vmatprep.subr.mxu0 0.0
      %1318 = vmatpush1.msra.mxu0 0.0
      %1319 = vmatprep.subr.mxu0 0.0
      %1320 = vmatpush1.msra.mxu0 0.0
      %1321 = vmatprep.subr.mxu0 0.0
      %1322 = vmatpush1.msra.mxu0 0.0
      %1323 = vmatprep.subr.mxu0 0.0
      %1324 = vmatpush1.msra.mxu0 0.0
      %1325 = vmatprep.subr.mxu0 0.0
      %1326 = vmatpush1.msra.mxu0 0.0
      %1327 = vmatprep.subr.mxu0 0.0
      %1328 = vmatpush1.msra.mxu0 0.0
      %1329 = vmatprep.subr.mxu0 0.0
      %1330 = vmatpush1.msra.mxu0 0.0
      %1331 = vmatprep.subr.mxu0 0.0
      %1332 = vmatpush1.msra.mxu0 0.0
      %1333 = vmatprep.subr.mxu0 0.0
      %1334 = vmatpush1.msra.mxu0 0.0
      %1335 = vmatprep.subr.mxu0 0.0
      %1336 = vmatpush1.msra.mxu0 0.0
      %1337 = vmatprep.subr.mxu0 0.0
      %1338 = vmatpush1.msra.mxu0 0.0
      %1339 = vmatprep.mubr.f32.mxu0 0.0
      %1340 = vmatmul.mubr.f32.gmra.mrb[0].mxu0 %v1264
      %v1341 = vpop.f32.mrb[0].mxu0
      %v1342 = vadd.f32 %v348, %v1341
      %v1343 = vpop.f32.mrb[0].mxu0
      %1344 = vmatprep.mubr.f32.mxu0 0.0
      %1345 = vmatmul.mubr.f32.gmra.mrb[0].mxu0 %v1267
      %v1346 = vpop.f32.mrb[0].mxu0
      %v1347 = vadd.f32 %v349, %v1346
      %v1348 = vpop.f32.mrb[0].mxu0
      %1349 = vmatprep.mubr.f32.mxu0 0.0
      %1350 = vmatmul.mubr.f32.gmra.mrb[0].mxu0 %v1270
      %v1351 = vpop.f32.mrb[0].mxu0
      %v1352 = vadd.f32 %v350, %v1351
      %v1353 = vpop.f32.mrb[0].mxu0
      %1354 = vmatprep.mubr.f32.mxu0 0.0
      %1355 = vmatmul.mubr.f32.gmra.mrb[0].mxu0 %v1273
      %v1356 = vpop.f32.mrb[0].mxu0
      %v1357 = vadd.f32 %v351, %v1356
      %v1358 = vpop.f32.mrb[0].mxu0
      %1359 = vdwg.mxu0
      %v1360 = vmax.f32 %v1342, 0.0
      %v1361 = vmax.f32 %v1347, 0.0
      %v1362 = vmax.f32 %v1352, 0.0
      %v1363 = vmax.f32 %v1357, 0.0
      %v1364 = vadd.f32 %v1360, %v1361
      %v1365 = vadd.f32 %v1364, %v1362
      %v1366 = vadd.f32 %v1365, %v1363
      %v1367 = vmul.f32 %v1366, 0.25
      %v1368 = vsel %vm649, %v1367, %v915
      %1369 = vmatprep.subr.mxu0 0.0
      %1370 = vmatpush1.msra.mxu0 %v352
      %1371 = vmatprep.subr.mxu0 0.0
      %1372 = vmatpush1.msra.mxu0 %v353
      %1373 = vmatprep.subr.mxu0 0.0
      %1374 = vmatpush1.msra.mxu0 %v354
      %1375 = vmatprep.subr.mxu0 0.0
      %1376 = vmatpush1.msra.mxu0 %v355
      %1377 = vmatprep.subr.mxu0 0.0
      %1378 = vmatpush1.msra.mxu0 %v356
      %1379 = vmatprep.subr.mxu0 0.0
      %1380 = vmatpush1.msra.mxu0 %v357
      %1381 = vmatprep.subr.mxu0 0.0
      %1382 = vmatpush1.msra.mxu0 %v358
      %1383 = vmatprep.subr.mxu0 0.0
      %1384 = vmatpush1.msra.mxu0 %v359
      %1385 = vmatprep.subr.mxu0 0.0
      %1386 = vmatpush1.msra.mxu0 %v360
      %1387 = vmatprep.subr.mxu0 0.0
      %1388 = vmatpush1.msra.mxu0 %v361
      %1389 = vmatprep.subr.mxu0 0.0
      %1390 = vmatpush1.msra.mxu0 %v362
      %1391 = vmatprep.subr.mxu0 0.0
      %1392 = vmatpush1.msra.mxu0 %v363
      %1393 = vmatprep.subr.mxu0 0.0
      %1394 = vmatpush1.msra.mxu0 %v364
      %1395 = vmatprep.subr.mxu0 0.0
      %1396 = vmatpush1.msra.mxu0 %v365
      %1397 = vmatprep.subr.mxu0 0.0
      %1398 = vmatpush1.msra.mxu0 %v366
      %1399 = vmatprep.subr.mxu0 0.0
      %1400 = vmatpush1.msra.mxu0 %v367
      %1401 = vmatprep.subr.mxu0 0.0
      %1402 = vmatpush1.msra.mxu0 0.0
      %1403 = vmatprep.subr.mxu0 0.0
      %1404 = vmatpush1.msra.mxu0 0.0
      %1405 = vmatprep.subr.mxu0 0.0
      %1406 = vmatpush1.msra.mxu0 0.0
      %1407 = vmatprep.subr.mxu0 0.0
      %1408 = vmatpush1.msra.mxu0 0.0
      %1409 = vmatprep.subr.mxu0 0.0
      %1410 = vmatpush1.msra.mxu0 0.0
      %1411 = vmatprep.subr.mxu0 0.0
      %1412 = vmatpush1.msra.mxu0 0.0
      %1413 = vmatprep.subr.mxu0 0.0
      %1414 = vmatpush1.msra.mxu0 0.0
      %1415 = vmatprep.subr.mxu0 0.0
      %1416 = vmatpush1.msra.mxu0 0.0
      %1417 = vmatprep.subr.mxu0 0.0
      %1418 = vmatpush1.msra.mxu0 0.0
      %1419 = vmatprep.subr.mxu0 0.0
      %1420 = vmatpush1.msra.mxu0 0.0
      %1421 = vmatprep.subr.mxu0 0.0
      %1422 = vmatpush1.msra.mxu0 0.0
      %1423 = vmatprep.subr.mxu0 0.0
      %1424 = vmatpush1.msra.mxu0 0.0
      %1425 = vmatprep.subr.mxu0 0.0
      %1426 = vmatpush1.msra.mxu0 0.0
      %1427 = vmatprep.subr.mxu0 0.0
      %1428 = vmatpush1.msra.mxu0 0.0
      %1429 = vmatprep.subr.mxu0 0.0
      %1430 = vmatpush1.msra.mxu0 0.0
      %1431 = vmatprep.subr.mxu0 0.0
      %1432 = vmatpush1.msra.mxu0 0.0
      %1433 = vmatprep.mubr.f32.mxu0 0.0
      %1434 = vmatmul.mubr.f32.gmra.mrb[0].mxu0 %v1368
      %v1435 = vpop.f32.mrb[0].mxu0
      %v1436 = vadd.f32 %v368, %v1435
      %v1437 = vpop.f32.mrb[0].mxu0
      %1438 = vdwg.mxu0
      %1439 = vst [vmem:[%s280] sm:$0xff] %v1436
      %p1440 = scmp.lt.s32.totalorder %s16, 3
      %s1441 = scalar_select %p1440, %s16, 3
      %s1442 = smul.addr %s1441, 8
      %s1443 = scalar_lea.vmem %s5, %s1442
      // Predicated region
      $region41: #{sagnn_forward.1} parent=39 // pred_check
        %p1444 = pneg %p159
      $region42: #{sagnn_forward.1} parent=39 // pred_check_branch
        %1446 = sbr.rel (%p1444) target = $region44
      $region43: #{sagnn_forward.1} parent=39 // pred_region
        _
      $region44: #{sagnn_forward.1} parent=39 // pred_fallthru
        _
    $region40: #{sagnn_forward.1} parent=5 // pred_fallthru
      _
    %p1447 = scmp.le.s32.totalorder 2, %s11
    // Predicated region
    $region45: #{sagnn_forward.1} parent=5 // pred_check
      %p1448 = pneg %p1447
    $region46: #{sagnn_forward.1} parent=5 // pred_check_branch
      %1450 = sbr.rel (%p1448) target = $region48
    $region47: #{sagnn_forward.1} parent=5 // pred_region
      %s1451 = ssub.s32 %s11, 2
      // Predicated region
      $region49: #{sagnn_forward.1} parent=47 // pred_check
        %p1452 = pneg %p165
      $region50: #{sagnn_forward.1} parent=47 // pred_check_branch
        %1454 = sbr.rel (%p1452) target = $region52
      $region51: #{sagnn_forward.1} parent=47 // pred_region
        %p1455 = scmp.lt.s32.totalorder %s17, 3
        %s1456 = scalar_select %p1455, %s17, 3
        %s1457 = smul.addr %s1456, 8
        %s1458 = scalar_lea.vmem %s5, %s1457
      $region52: #{sagnn_forward.1} parent=47 // pred_fallthru
        _
    $region48: #{sagnn_forward.1} parent=5 // pred_fallthru
      _
  $region6: #{sagnn_forward.1} parent=0 // loop_footer
    %s15 = sadd.s32 1, %s11
  $region7: #{sagnn_forward.1} parent=0 // loop_footer_branch
    %10 = sbr.rel target = $region3
  $region8: #{sagnn_forward.1} parent=0 // loop_exit
    _

</llo_original>
